<compile_context>
chip_gen: v5e
topology: v5e:2x2
jax: 0.10.0
libtpu: 0.0.40
codegen_flags: <defaults>
</compile_context>

<pallas_src>
import collections

import numpy as np
import jax
import jax.numpy as jnp
from jax import lax
from jax.experimental import pallas as pl
from jax.experimental.pallas import tpu as pltpu


# ----------------------------------------------------------------------------
# Tree utilities (mirror torch_treecrf helpers, pure Python / numpy)
# ----------------------------------------------------------------------------
def _parent_indices(adj):
    return [np.nonzero(adj[i, :])[0] for i in range(adj.shape[0])]


def _child_indices(adj):
    return [np.nonzero(adj[:, i])[0] for i in range(adj.shape[0])]


def _walk(primary, secondary, seeds, n_labels):
    """Deque walk (mirrors _downward_walk / _upward_walk in torch_treecrf)."""
    path = []
    todo = collections.deque(int(s) for s in seeds)
    done = np.zeros(n_labels, dtype=bool)
    while todo:
        i = todo.popleft()
        if done[i]:
            continue
        if not np.all(done[primary[i]]):
            todo.append(i)
            continue
        todo.extend(int(k) for k in secondary[i])
        done[i] = True
        path.append(i)
    assert len(path) == n_labels
    return path


def _downward_walk(adj, parents, children):
    roots = np.where(adj.sum(axis=1) == 0)[0]
    return _walk(parents, children, roots, adj.shape[0])


def _upward_walk(adj, parents, children):
    leaves = np.where(adj.sum(axis=0) == 0)[0]
    return _walk(children, parents, leaves, adj.shape[0])


def _make_waves(order, dep_lists, recv_lists, L):
    """Group message-passing edges into independent waves (static schedule).

    order      : topological processing order (deps of j appear before j)
    dep_lists  : dep_lists[j]  = labels whose messages must reach j before j
                 may send (children for the upward pass, parents downward)
    recv_lists : recv_lists[j] = receivers of j's messages
    Returns a list of edge chunks, each chunk holding at most L (sender,
    receiver) pairs; chunks are executed in order.
    """
    wave = {}
    for j in order:
        deps = dep_lists[j]
        wave[j] = 0 if len(deps) == 0 else 1 + max(wave[int(d)] for d in deps)

    by_wave = {}
    for j in order:
        for r in recv_lists[j]:
            by_wave.setdefault(wave[j], []).append((int(j), int(r)))

    chunks = []
    for w in sorted(by_wave):
        edges = by_wave[w]
        for i in range(0, len(edges), L):
            chunks.append(edges[i:i + L])
    if not chunks:
        chunks = [[]]
    return chunks


def _build_wave_tensors(chunks, L):
    """Build stacked-class one-hot gather/scatter matrices and potential
    index arrays for all waves.

    Per wave (chunk of <= L edges), stacked-class layout (2L rows = classes
    0 then 1 of every label):
      sel  (4L, 2L): rows 0..2L-1 gather the sender's class-0 row (A branch),
                     rows 2L..4L-1 gather the sender's class-1 row (B branch);
                     within each half, row i is for receiver class 0 and
                     row L+i for receiver class 1 of edge i.
      scat (2L, 2L): column i -> receiver row r (class 0),
                     column L+i -> receiver row L+r (class 1).
    Padded edge rows have all-zero gather rows and all-zero scatter columns,
    so they never contribute (lae(0,0) = log 2 is simply dropped).
    """
    L2, L4 = 2 * L, 4 * L
    n_waves = len(chunks)
    sel = np.zeros((n_waves * L4, L2), np.float32)
    scat = np.zeros((n_waves * L2, L2), np.float32)
    recv = np.zeros((n_waves * L2,), np.int32)
    send = np.zeros((n_waves * L2,), np.int32)
    cls_r = np.zeros((n_waves * L2,), np.int32)
    mask = np.zeros((n_waves * L2,), np.float32)
    for w, edges in enumerate(chunks):
        s4, s2 = w * L4, w * L2
        for i, (j, r) in enumerate(edges):
            # gather rows: A = sender class 0, B = sender class 1
            sel[s4 + i, j] = 1.0                 # A, receiver class 0
            sel[s4 + L + i, j] = 1.0             # A, receiver class 1
            sel[s4 + L2 + i, L + j] = 1.0        # B, receiver class 0
            sel[s4 + L2 + L + i, L + j] = 1.0    # B, receiver class 1
            # scatter: messages -> receiver rows, per receiver class
            scat[s2 + r, i] = 1.0
            scat[s2 + L + r, L + i] = 1.0
            for cr, row in ((0, i), (1, L + i)):
                recv[s2 + row] = r
                send[s2 + row] = j
                cls_r[s2 + row] = cr
                mask[s2 + row] = 1.0
    return sel, scat, recv, send, cls_r, mask


# ----------------------------------------------------------------------------
# Pallas kernel
# ----------------------------------------------------------------------------
def make_tree_crf_kernel(L, n_up_waves, n_dn_waves):
    L2, L4 = 2 * L, 4 * L

    def kernel(x_ref, w_ref, b_ref, sel_ref, scat_ref, p_ref, out_ref):
        # x_ref   : (F, Bt)  bf16   lane-dense input tile (batch in lanes)
        # w_ref   : (L, F)   bf16   linear weight
        # b_ref   : (L, 1)   f32    linear bias
        # sel_ref : (n_waves*4L, 2L) f32   one-hot gather matrices (stacked)
        # scat_ref: (n_waves*2L, 2L) f32   one-hot scatter matrices (stacked)
        # p_ref   : (n_waves*4L, 1)  f32   wave-ordered pairwise potentials
        # out_ref : (L, Bt)  f32    class-1 marginals

        # Linear layer on the MXU: E[l, b] = sum_f w[l, f] * x[f, b] + bias.
        E = lax.dot_general(
            w_ref[...], x_ref[...],
            dimension_numbers=(((1,), (0,)), ((), ())),
            preferred_element_type=jnp.float32) + b_ref[...]

        # Stacked-class emissions: rows 0..L-1 = class 0 (-E), L..2L-1 = +E.
        emis = jnp.concatenate([-E, E], axis=0)            # (2L, Bt)

        def lae(a, b):   # logaddexp, single-exp form
            m = jnp.maximum(a, b)
            return m + jnp.log(1.0 + jnp.exp(-jnp.abs(a - b)))

        def message_pass(wave_lo, n_waves):
            # acc = emissions + accumulated log-messages (stacked classes).
            acc = emis
            for w_idx in range(n_waves):
                base4 = (wave_lo + w_idx) * L4
                base2 = (wave_lo + w_idx) * L2
                # One gather matmul produces both sender-class branches.
                g = jnp.dot(sel_ref[base4:base4 + L4, :], acc,
                            preferred_element_type=jnp.float32)   # (4L, Bt)
                a = g[:L2, :] + p_ref[base4:base4 + L2, :]
                b = g[L2:, :] + p_ref[base4 + L2:base4 + L4, :]
                m = lae(a, b)                                       # (2L, Bt)
                # Scatter-add: keep the dot feeding the accumulator directly
                # (folds into the MXU result path / MRB on v7x).
                acc = acc + jnp.dot(scat_ref[base2:base2 + L2, :], m,
                                    preferred_element_type=jnp.float32)
            return acc   # = emis + messages

        acc_a = message_pass(0, n_up_waves)                 # leaves -> roots
        acc_b = message_pass(n_up_waves, n_dn_waves)        # roots  -> leaves

        # scores = emis + alphas + betas;
        # s1 - s0 = (acc_a1 - acc_a0) + (acc_b1 - acc_b0) - 2E
        diff = (acc_a[L:, :] - acc_a[:L, :]) \
             + (acc_b[L:, :] - acc_b[:L, :]) - 2.0 * E
        # P(y=1) = sigmoid(diff); approx-reciprocal keeps it on the EUP.
        out_ref[...] = pl.reciprocal(1.0 + jnp.exp(-diff), approx=True)

    return kernel


def make_tree_crf_forward(adjacency, *, block_b=None):
    """Build forward(x, w, bias, pairs) -> (B, L) class-1 marginals."""
    adj = np.asarray(adjacency, np.float32)
    L = adj.shape[0]
    parents = _parent_indices(adj)
    children = _child_indices(adj)
    upward_order = _upward_walk(adj, parents, children)
    downward_order = _downward_walk(adj, parents, children)

    up_chunks = _make_waves(upward_order, children, parents, L)
    dn_chunks = _make_waves(downward_order, parents, children, L)
    n_up, n_dn = len(up_chunks), len(dn_chunks)
    n_waves = n_up + n_dn
    L2, L4 = 2 * L, 4 * L

    sel_np, scat_np, recv_i, send_i, cls_i, mask_np = _build_wave_tensors(
        up_chunks + dn_chunks, L)
    sel_all = jnp.asarray(sel_np)       # (n_waves*4L, 2L)
    scat_all = jnp.asarray(scat_np)     # (n_waves*2L, 2L)

    kernel = make_tree_crf_kernel(L, n_up, n_dn)

    def forward(x, w, bias, pairs):
        B, F = x.shape

        def tile_bytes(b):
            # double-buffered x tile (bf16) + double-buffered out tile (f32)
            return 2 * (F * b * 2) + 2 * (L * b * 4)

        if block_b is not None:
            bb = block_b
        else:
            try:
                kind = jax.devices()[0].device_kind.lower()
            except Exception:
                kind = ""
            n_tc = 2 if "v7" in kind else 1       # v7x: 2 TensorCores / chip
            # >= ~3 grid steps per TC so the x DMA overlaps with compute.
            target = max(1, B // (3 * n_tc))
            bb = min(max(128, target), 2048)
            bb = -(-bb // 128) * 128               # lane-dense blocks
            # VMEM-aware cap (v7x has 64 MiB physical, 32 MiB default scoped).
            vmem_budget = 24 << 20
            while bb > 128 and tile_bytes(bb) > vmem_budget:
                bb -= 128

        pad = (-B) % bb
        Bp = B + pad

        # Lane-dense, bf16 x tile: (F, Bp) with batch along the 128-wide lanes.
        x_t = x.astype(jnp.bfloat16).T
        if pad:
            x_t = jnp.pad(x_t, ((0, 0), (0, pad)))

        w_bf = w.astype(jnp.bfloat16)
        b2 = bias.reshape(L, 1).astype(jnp.float32)

        # Single merged wave-ordered pairwise-potential input:
        # rows [w*4L, w*4L+2L) = A potentials, [w*4L+2L, (w+1)*4L) = B.
        pairs_f = pairs.astype(jnp.float32)
        mask = jnp.asarray(mask_np)
        pA = pairs_f[recv_i, send_i, cls_i, 0] * mask       # (n_waves*2L,)
        pB = pairs_f[recv_i, send_i, cls_i, 1] * mask
        p_all = jnp.stack([pA.reshape(n_waves, L2),
                           pB.reshape(n_waves, L2)], axis=1).reshape(n_waves * L4, 1)

        const_bytes = int(L * F * 2 + L * 4
                          + sel_np.size * 4 + scat_np.size * 4 + n_waves * L4 * 4)
        vmem_limit = int(min(48 << 20,
                             max(16 << 20,
                                 2 * tile_bytes(bb) + 2 * const_bytes + (4 << 20))))

        full = lambda i: (0, 0)
        out = pl.pallas_call(
            kernel,
            out_shape=jax.ShapeDtypeStruct((L, Bp), jnp.float32),
            grid_spec=pltpu.PrefetchScalarGridSpec(
                num_scalar_prefetch=0,
                grid=(Bp // bb,),
                in_specs=[
                    pl.BlockSpec((F, bb), lambda i: (0, i)),        # x (lane-dense)
                    pl.BlockSpec((L, F), full),                     # linear weight
                    pl.BlockSpec((L, 1), full),                     # linear bias
                    pl.BlockSpec((n_waves * L4, L2), full),         # gather one-hots
                    pl.BlockSpec((n_waves * L2, L2), full),         # scatter one-hots
                    pl.BlockSpec((n_waves * L4, 1), full),          # pair potentials
                ],
                out_specs=pl.BlockSpec((L, bb), lambda i: (0, i)),
            ),
            compiler_params=pltpu.CompilerParams(
                dimension_semantics=("parallel",),
                vmem_limit_bytes=vmem_limit),
        )(x_t, w_bf, b2, sel_all, scat_all, p_all)

        return out[:, :B].T          # back to the PyTorch (B, L) layout

    return forward


# ----------------------------------------------------------------------------
# Pure-JAX reference (mirrors the PyTorch TreeCRF forward)
# ----------------------------------------------------------------------------
def reference_forward(x, w, bias, pairs, parents, children,
                      upward_order, downward_order):
    E = x @ w.T + bias                            # (B, L)
    emis = jnp.stack([-E, E], axis=1)             # (B, 2, L)
    B, _, L = emis.shape

    alphas = jnp.zeros((B, 2, L), jnp.float32)
    for j in upward_order:
        local = emis[:, :, j] + alphas[:, :, j]   # (B, 2)
        for p in parents[j]:
            msg = jax.nn.logsumexp(local[:, None, :] + pairs[int(p), j][None, :, :],
                                   axis=2)        # (B, 2)
            alphas = alphas.at[:, :, int(p)].add(msg)

    betas = jnp.zeros((B, 2, L), jnp.float32)
    for j in downward_order:
        local = emis[:, :, j] + betas[:, :, j]
        for c in children[j]:
            msg = jax.nn.logsumexp(local[:, None, :] + pairs[int(c), j][None, :, :],
                                   axis=2)
            betas = betas.at[:, :, int(c)].add(msg)

    scores = emis + alphas + betas
    logZ = jax.nn.logsumexp(scores, axis=1, keepdims=True)
    logP = scores - logZ
    return jnp.exp(logP[:, 1, :])


# ----------------------------------------------------------------------------
if __name__ == "__main__":
    # Problem sizes: batch=256, in_features=32, n_labels=8, n_classes=2.
    B, F, L = 256, 32, 8

    # Small tree over 8 labels (adjacency[child, parent] = 1):
    #        0
    #       / \
    #      1   2
    #     / \ / \
    #    3  4 5  6
    #    |
    #    7
    adjacency = np.zeros((L, L), dtype=np.float32)
    for child, parent in [(1, 0), (2, 0), (3, 1), (4, 1), (5, 2), (6, 2), (7, 3)]:
        adjacency[child, parent] = 1.0

    parents = _parent_indices(adjacency)
    children = _child_indices(adjacency)
    upward_order = _upward_walk(adjacency, parents, children)
    downward_order = _downward_walk(adjacency, parents, children)

    # Deterministic inputs / parameters (torch init has pairs == 0; we use
    # small non-zero values so the pairwise-potential path is exercised).
    key = jax.random.PRNGKey(0)
    kx, kw, kb, kp = jax.random.split(key, 4)
    x = jax.random.normal(kx, (B, F), jnp.float32)
    w = jax.random.normal(kw, (L, F), jnp.float32) * (1.0 / np.sqrt(F))
    bias = jax.random.normal(kb, (L,), jnp.float32) * 0.1
    pairs = jax.random.normal(kp, (L, L, 2, 2), jnp.float32) * 0.5

    forward = jax.jit(make_tree_crf_forward(adjacency))
    out = jax.block_until_ready(forward(x, w, bias, pairs))

    # Reference uses the same bf16-rounded MXU operands so the comparison
    # isolates kernel structure rather than operand quantization.
    x_q = x.astype(jnp.bfloat16).astype(jnp.float32)
    w_q = w.astype(jnp.bfloat16).astype(jnp.float32)
    ref = jax.block_until_ready(
        reference_forward(x_q, w_q, bias, pairs, parents, children,
                          upward_order, downward_order))

    np.testing.assert_allclose(np.asarray(out), np.asarray(ref),
                               rtol=2e-3, atol=2e-3)
    assert out.shape == (B, L)
    assert np.all(np.asarray(out) >= 0.0) and np.all(np.asarray(out) <= 1.0 + 1e-5)

    print("KERNEL_OK")
</pallas_src>

<mosaic_0001>
module attributes {stable_mosaic.version = 11 : i64} {
  func.func @kernel(%arg0: i32, %arg1: memref<32x128xbf16, #tpu.memory_space<vmem>>, %arg2: memref<8x32xbf16, #tpu.memory_space<vmem>>, %arg3: memref<8x1xf32, #tpu.memory_space<vmem>>, %arg4: memref<192x16xf32, #tpu.memory_space<vmem>>, %arg5: memref<96x16xf32, #tpu.memory_space<vmem>>, %arg6: memref<192x1xf32, #tpu.memory_space<vmem>>, %arg7: memref<8x128xf32, #tpu.memory_space<vmem>>) attributes {dimension_semantics = [#tpu.dimension_semantics<parallel>], iteration_bounds = array<i64: 2>, scalar_prefetch = 0 : i64, scratch_operands = 0 : i64, tpu.core_type = #tpu.core_type<tc>, window_params = [{transform_indices = @transform_0, window_bounds = array<i64: 32, 128>}, {pipeline_mode = #tpu.pipeline_mode<synchronous>, transform_indices = @transform_1, window_bounds = array<i64: 8, 32>}, {pipeline_mode = #tpu.pipeline_mode<synchronous>, transform_indices = @transform_2, window_bounds = array<i64: 8, 1>}, {pipeline_mode = #tpu.pipeline_mode<synchronous>, transform_indices = @transform_3, window_bounds = array<i64: 192, 16>}, {pipeline_mode = #tpu.pipeline_mode<synchronous>, transform_indices = @transform_4, window_bounds = array<i64: 96, 16>}, {pipeline_mode = #tpu.pipeline_mode<synchronous>, transform_indices = @transform_5, window_bounds = array<i64: 192, 1>}, {transform_indices = @transform_6, window_bounds = array<i64: 8, 128>}]} {
    %c0 = arith.constant 0 : index
    %c0_0 = arith.constant 0 : index
    %0 = vector.load %arg2[%c0, %c0_0] : memref<8x32xbf16, #tpu.memory_space<vmem>>, vector<8x32xbf16>
    %c0_1 = arith.constant 0 : index
    %c0_2 = arith.constant 0 : index
    %1 = vector.load %arg1[%c0_1, %c0_2] : memref<32x128xbf16, #tpu.memory_space<vmem>>, vector<32x128xbf16>
    %cst = arith.constant dense<0.000000e+00> : vector<8x128xf32>
    %2 = tpu.matmul %0, %1, %cst {dimension_numbers = #tpu.dot_dimension_numbers<[1], [0], [0], [1], [0, 0, 1, 1], [], []>} : vector<8x32xbf16>, vector<32x128xbf16>, vector<8x128xf32> -> vector<8x128xf32>
    %c0_3 = arith.constant 0 : index
    %c0_4 = arith.constant 0 : index
    %3 = vector.load %arg3[%c0_3, %c0_4] : memref<8x1xf32, #tpu.memory_space<vmem>>, vector<8x1xf32>
    %4 = vector.broadcast %3 : vector<8x1xf32> to vector<8x128xf32>
    %5 = arith.addf %2, %4 : vector<8x128xf32>
    %cst_5 = arith.constant 0.000000e+00 : f32
    %6 = vector.broadcast %cst_5 : f32 to vector<8x128xf32>
    %7 = arith.subf %6, %5 : vector<8x128xf32>
    %8 = tpu.concatenate %7, %5 in 0 : vector<8x128xf32>, vector<8x128xf32> -> vector<16x128xf32>
    %c0_6 = arith.constant 0 : index
    %c0_7 = arith.constant 0 : index
    %9 = vector.load %arg4[%c0_6, %c0_7] : memref<192x16xf32, #tpu.memory_space<vmem>>, vector<32x16xf32>
    %cst_8 = arith.constant dense<0.000000e+00> : vector<32x128xf32>
    %10 = tpu.matmul %9, %8, %cst_8 {dimension_numbers = #tpu.dot_dimension_numbers<[1], [0], [0], [1], [0, 0, 1, 1], [], []>} : vector<32x16xf32>, vector<16x128xf32>, vector<32x128xf32> -> vector<32x128xf32>
    %11 = vector.extract_strided_slice %10 {offsets = [0, 0], sizes = [16, 128], strides = [1, 1]} : vector<32x128xf32> to vector<16x128xf32>
    %c0_9 = arith.constant 0 : index
    %c0_10 = arith.constant 0 : index
    %12 = vector.load %arg6[%c0_9, %c0_10] : memref<192x1xf32, #tpu.memory_space<vmem>>, vector<16x1xf32>
    %13 = vector.broadcast %12 : vector<16x1xf32> to vector<16x128xf32>
    %14 = arith.addf %11, %13 : vector<16x128xf32>
    %15 = vector.extract_strided_slice %10 {offsets = [16, 0], sizes = [16, 128], strides = [1, 1]} : vector<32x128xf32> to vector<16x128xf32>
    %c16 = arith.constant 16 : index
    %c0_11 = arith.constant 0 : index
    %16 = vector.load %arg6[%c16, %c0_11] : memref<192x1xf32, #tpu.memory_space<vmem>>, vector<16x1xf32>
    %17 = vector.broadcast %16 : vector<16x1xf32> to vector<16x128xf32>
    %18 = arith.addf %15, %17 : vector<16x128xf32>
    %19 = arith.maximumf %14, %18 : vector<16x128xf32>
    %20 = arith.subf %14, %18 : vector<16x128xf32>
    %21 = math.absf %20 : vector<16x128xf32>
    %cst_12 = arith.constant 0.000000e+00 : f32
    %22 = vector.broadcast %cst_12 : f32 to vector<16x128xf32>
    %23 = arith.subf %22, %21 : vector<16x128xf32>
    %24 = math.exp %23 : vector<16x128xf32>
    %cst_13 = arith.constant 1.000000e+00 : f32
    %25 = vector.broadcast %cst_13 : f32 to vector<16x128xf32>
    %26 = arith.addf %25, %24 : vector<16x128xf32>
    %27 = math.log %26 : vector<16x128xf32>
    %28 = arith.addf %19, %27 : vector<16x128xf32>
    %c0_14 = arith.constant 0 : index
    %c0_15 = arith.constant 0 : index
    %29 = vector.load %arg5[%c0_14, %c0_15] : memref<96x16xf32, #tpu.memory_space<vmem>>, vector<16x16xf32>
    %cst_16 = arith.constant dense<0.000000e+00> : vector<16x128xf32>
    %30 = tpu.matmul %29, %28, %cst_16 {dimension_numbers = #tpu.dot_dimension_numbers<[1], [0], [0], [1], [0, 0, 1, 1], [], []>} : vector<16x16xf32>, vector<16x128xf32>, vector<16x128xf32> -> vector<16x128xf32>
    %31 = arith.addf %8, %30 : vector<16x128xf32>
    %c32 = arith.constant 32 : index
    %c0_17 = arith.constant 0 : index
    %32 = vector.load %arg4[%c32, %c0_17] : memref<192x16xf32, #tpu.memory_space<vmem>>, vector<32x16xf32>
    %cst_18 = arith.constant dense<0.000000e+00> : vector<32x128xf32>
    %33 = tpu.matmul %32, %31, %cst_18 {dimension_numbers = #tpu.dot_dimension_numbers<[1], [0], [0], [1], [0, 0, 1, 1], [], []>} : vector<32x16xf32>, vector<16x128xf32>, vector<32x128xf32> -> vector<32x128xf32>
    %34 = vector.extract_strided_slice %33 {offsets = [0, 0], sizes = [16, 128], strides = [1, 1]} : vector<32x128xf32> to vector<16x128xf32>
    %c32_19 = arith.constant 32 : index
    %c0_20 = arith.constant 0 : index
    %35 = vector.load %arg6[%c32_19, %c0_20] : memref<192x1xf32, #tpu.memory_space<vmem>>, vector<16x1xf32>
    %36 = vector.broadcast %35 : vector<16x1xf32> to vector<16x128xf32>
    %37 = arith.addf %34, %36 : vector<16x128xf32>
    %38 = vector.extract_strided_slice %33 {offsets = [16, 0], sizes = [16, 128], strides = [1, 1]} : vector<32x128xf32> to vector<16x128xf32>
    %c48 = arith.constant 48 : index
    %c0_21 = arith.constant 0 : index
    %39 = vector.load %arg6[%c48, %c0_21] : memref<192x1xf32, #tpu.memory_space<vmem>>, vector<16x1xf32>
    %40 = vector.broadcast %39 : vector<16x1xf32> to vector<16x128xf32>
    %41 = arith.addf %38, %40 : vector<16x128xf32>
    %42 = arith.maximumf %37, %41 : vector<16x128xf32>
    %43 = arith.subf %37, %41 : vector<16x128xf32>
    %44 = math.absf %43 : vector<16x128xf32>
    %cst_22 = arith.constant 0.000000e+00 : f32
    %45 = vector.broadcast %cst_22 : f32 to vector<16x128xf32>
    %46 = arith.subf %45, %44 : vector<16x128xf32>
    %47 = math.exp %46 : vector<16x128xf32>
    %cst_23 = arith.constant 1.000000e+00 : f32
    %48 = vector.broadcast %cst_23 : f32 to vector<16x128xf32>
    %49 = arith.addf %48, %47 : vector<16x128xf32>
    %50 = math.log %49 : vector<16x128xf32>
    %51 = arith.addf %42, %50 : vector<16x128xf32>
    %c16_24 = arith.constant 16 : index
    %c0_25 = arith.constant 0 : index
    %52 = vector.load %arg5[%c16_24, %c0_25] : memref<96x16xf32, #tpu.memory_space<vmem>>, vector<16x16xf32>
    %cst_26 = arith.constant dense<0.000000e+00> : vector<16x128xf32>
    %53 = tpu.matmul %52, %51, %cst_26 {dimension_numbers = #tpu.dot_dimension_numbers<[1], [0], [0], [1], [0, 0, 1, 1], [], []>} : vector<16x16xf32>, vector<16x128xf32>, vector<16x128xf32> -> vector<16x128xf32>
    %54 = arith.addf %31, %53 : vector<16x128xf32>
    %c64 = arith.constant 64 : index
    %c0_27 = arith.constant 0 : index
    %55 = vector.load %arg4[%c64, %c0_27] : memref<192x16xf32, #tpu.memory_space<vmem>>, vector<32x16xf32>
    %cst_28 = arith.constant dense<0.000000e+00> : vector<32x128xf32>
    %56 = tpu.matmul %55, %54, %cst_28 {dimension_numbers = #tpu.dot_dimension_numbers<[1], [0], [0], [1], [0, 0, 1, 1], [], []>} : vector<32x16xf32>, vector<16x128xf32>, vector<32x128xf32> -> vector<32x128xf32>
    %57 = vector.extract_strided_slice %56 {offsets = [0, 0], sizes = [16, 128], strides = [1, 1]} : vector<32x128xf32> to vector<16x128xf32>
    %c64_29 = arith.constant 64 : index
    %c0_30 = arith.constant 0 : index
    %58 = vector.load %arg6[%c64_29, %c0_30] : memref<192x1xf32, #tpu.memory_space<vmem>>, vector<16x1xf32>
    %59 = vector.broadcast %58 : vector<16x1xf32> to vector<16x128xf32>
    %60 = arith.addf %57, %59 : vector<16x128xf32>
    %61 = vector.extract_strided_slice %56 {offsets = [16, 0], sizes = [16, 128], strides = [1, 1]} : vector<32x128xf32> to vector<16x128xf32>
    %c80 = arith.constant 80 : index
    %c0_31 = arith.constant 0 : index
    %62 = vector.load %arg6[%c80, %c0_31] : memref<192x1xf32, #tpu.memory_space<vmem>>, vector<16x1xf32>
    %63 = vector.broadcast %62 : vector<16x1xf32> to vector<16x128xf32>
    %64 = arith.addf %61, %63 : vector<16x128xf32>
    %65 = arith.maximumf %60, %64 : vector<16x128xf32>
    %66 = arith.subf %60, %64 : vector<16x128xf32>
    %67 = math.absf %66 : vector<16x128xf32>
    %cst_32 = arith.constant 0.000000e+00 : f32
    %68 = vector.broadcast %cst_32 : f32 to vector<16x128xf32>
    %69 = arith.subf %68, %67 : vector<16x128xf32>
    %70 = math.exp %69 : vector<16x128xf32>
    %cst_33 = arith.constant 1.000000e+00 : f32
    %71 = vector.broadcast %cst_33 : f32 to vector<16x128xf32>
    %72 = arith.addf %71, %70 : vector<16x128xf32>
    %73 = math.log %72 : vector<16x128xf32>
    %74 = arith.addf %65, %73 : vector<16x128xf32>
    %c32_34 = arith.constant 32 : index
    %c0_35 = arith.constant 0 : index
    %75 = vector.load %arg5[%c32_34, %c0_35] : memref<96x16xf32, #tpu.memory_space<vmem>>, vector<16x16xf32>
    %cst_36 = arith.constant dense<0.000000e+00> : vector<16x128xf32>
    %76 = tpu.matmul %75, %74, %cst_36 {dimension_numbers = #tpu.dot_dimension_numbers<[1], [0], [0], [1], [0, 0, 1, 1], [], []>} : vector<16x16xf32>, vector<16x128xf32>, vector<16x128xf32> -> vector<16x128xf32>
    %77 = arith.addf %54, %76 : vector<16x128xf32>
    %c96 = arith.constant 96 : index
    %c0_37 = arith.constant 0 : index
    %78 = vector.load %arg4[%c96, %c0_37] : memref<192x16xf32, #tpu.memory_space<vmem>>, vector<32x16xf32>
    %cst_38 = arith.constant dense<0.000000e+00> : vector<32x128xf32>
    %79 = tpu.matmul %78, %8, %cst_38 {dimension_numbers = #tpu.dot_dimension_numbers<[1], [0], [0], [1], [0, 0, 1, 1], [], []>} : vector<32x16xf32>, vector<16x128xf32>, vector<32x128xf32> -> vector<32x128xf32>
    %80 = vector.extract_strided_slice %79 {offsets = [0, 0], sizes = [16, 128], strides = [1, 1]} : vector<32x128xf32> to vector<16x128xf32>
    %c96_39 = arith.constant 96 : index
    %c0_40 = arith.constant 0 : index
    %81 = vector.load %arg6[%c96_39, %c0_40] : memref<192x1xf32, #tpu.memory_space<vmem>>, vector<16x1xf32>
    %82 = vector.broadcast %81 : vector<16x1xf32> to vector<16x128xf32>
    %83 = arith.addf %80, %82 : vector<16x128xf32>
    %84 = vector.extract_strided_slice %79 {offsets = [16, 0], sizes = [16, 128], strides = [1, 1]} : vector<32x128xf32> to vector<16x128xf32>
    %c112 = arith.constant 112 : index
    %c0_41 = arith.constant 0 : index
    %85 = vector.load %arg6[%c112, %c0_41] : memref<192x1xf32, #tpu.memory_space<vmem>>, vector<16x1xf32>
    %86 = vector.broadcast %85 : vector<16x1xf32> to vector<16x128xf32>
    %87 = arith.addf %84, %86 : vector<16x128xf32>
    %88 = arith.maximumf %83, %87 : vector<16x128xf32>
    %89 = arith.subf %83, %87 : vector<16x128xf32>
    %90 = math.absf %89 : vector<16x128xf32>
    %cst_42 = arith.constant 0.000000e+00 : f32
    %91 = vector.broadcast %cst_42 : f32 to vector<16x128xf32>
    %92 = arith.subf %91, %90 : vector<16x128xf32>
    %93 = math.exp %92 : vector<16x128xf32>
    %cst_43 = arith.constant 1.000000e+00 : f32
    %94 = vector.broadcast %cst_43 : f32 to vector<16x128xf32>
    %95 = arith.addf %94, %93 : vector<16x128xf32>
    %96 = math.log %95 : vector<16x128xf32>
    %97 = arith.addf %88, %96 : vector<16x128xf32>
    %c48_44 = arith.constant 48 : index
    %c0_45 = arith.constant 0 : index
    %98 = vector.load %arg5[%c48_44, %c0_45] : memref<96x16xf32, #tpu.memory_space<vmem>>, vector<16x16xf32>
    %cst_46 = arith.constant dense<0.000000e+00> : vector<16x128xf32>
    %99 = tpu.matmul %98, %97, %cst_46 {dimension_numbers = #tpu.dot_dimension_numbers<[1], [0], [0], [1], [0, 0, 1, 1], [], []>} : vector<16x16xf32>, vector<16x128xf32>, vector<16x128xf32> -> vector<16x128xf32>
    %100 = arith.addf %8, %99 : vector<16x128xf32>
    %c128 = arith.constant 128 : index
    %c0_47 = arith.constant 0 : index
    %101 = vector.load %arg4[%c128, %c0_47] : memref<192x16xf32, #tpu.memory_space<vmem>>, vector<32x16xf32>
    %cst_48 = arith.constant dense<0.000000e+00> : vector<32x128xf32>
    %102 = tpu.matmul %101, %100, %cst_48 {dimension_numbers = #tpu.dot_dimension_numbers<[1], [0], [0], [1], [0, 0, 1, 1], [], []>} : vector<32x16xf32>, vector<16x128xf32>, vector<32x128xf32> -> vector<32x128xf32>
    %103 = vector.extract_strided_slice %102 {offsets = [0, 0], sizes = [16, 128], strides = [1, 1]} : vector<32x128xf32> to vector<16x128xf32>
    %c128_49 = arith.constant 128 : index
    %c0_50 = arith.constant 0 : index
    %104 = vector.load %arg6[%c128_49, %c0_50] : memref<192x1xf32, #tpu.memory_space<vmem>>, vector<16x1xf32>
    %105 = vector.broadcast %104 : vector<16x1xf32> to vector<16x128xf32>
    %106 = arith.addf %103, %105 : vector<16x128xf32>
    %107 = vector.extract_strided_slice %102 {offsets = [16, 0], sizes = [16, 128], strides = [1, 1]} : vector<32x128xf32> to vector<16x128xf32>
    %c144 = arith.constant 144 : index
    %c0_51 = arith.constant 0 : index
    %108 = vector.load %arg6[%c144, %c0_51] : memref<192x1xf32, #tpu.memory_space<vmem>>, vector<16x1xf32>
    %109 = vector.broadcast %108 : vector<16x1xf32> to vector<16x128xf32>
    %110 = arith.addf %107, %109 : vector<16x128xf32>
    %111 = arith.maximumf %106, %110 : vector<16x128xf32>
    %112 = arith.subf %106, %110 : vector<16x128xf32>
    %113 = math.absf %112 : vector<16x128xf32>
    %cst_52 = arith.constant 0.000000e+00 : f32
    %114 = vector.broadcast %cst_52 : f32 to vector<16x128xf32>
    %115 = arith.subf %114, %113 : vector<16x128xf32>
    %116 = math.exp %115 : vector<16x128xf32>
    %cst_53 = arith.constant 1.000000e+00 : f32
    %117 = vector.broadcast %cst_53 : f32 to vector<16x128xf32>
    %118 = arith.addf %117, %116 : vector<16x128xf32>
    %119 = math.log %118 : vector<16x128xf32>
    %120 = arith.addf %111, %119 : vector<16x128xf32>
    %c64_54 = arith.constant 64 : index
    %c0_55 = arith.constant 0 : index
    %121 = vector.load %arg5[%c64_54, %c0_55] : memref<96x16xf32, #tpu.memory_space<vmem>>, vector<16x16xf32>
    %cst_56 = arith.constant dense<0.000000e+00> : vector<16x128xf32>
    %122 = tpu.matmul %121, %120, %cst_56 {dimension_numbers = #tpu.dot_dimension_numbers<[1], [0], [0], [1], [0, 0, 1, 1], [], []>} : vector<16x16xf32>, vector<16x128xf32>, vector<16x128xf32> -> vector<16x128xf32>
    %123 = arith.addf %100, %122 : vector<16x128xf32>
    %c160 = arith.constant 160 : index
    %c0_57 = arith.constant 0 : index
    %124 = vector.load %arg4[%c160, %c0_57] : memref<192x16xf32, #tpu.memory_space<vmem>>, vector<32x16xf32>
    %cst_58 = arith.constant dense<0.000000e+00> : vector<32x128xf32>
    %125 = tpu.matmul %124, %123, %cst_58 {dimension_numbers = #tpu.dot_dimension_numbers<[1], [0], [0], [1], [0, 0, 1, 1], [], []>} : vector<32x16xf32>, vector<16x128xf32>, vector<32x128xf32> -> vector<32x128xf32>
    %126 = vector.extract_strided_slice %125 {offsets = [0, 0], sizes = [16, 128], strides = [1, 1]} : vector<32x128xf32> to vector<16x128xf32>
    %c160_59 = arith.constant 160 : index
    %c0_60 = arith.constant 0 : index
    %127 = vector.load %arg6[%c160_59, %c0_60] : memref<192x1xf32, #tpu.memory_space<vmem>>, vector<16x1xf32>
    %128 = vector.broadcast %127 : vector<16x1xf32> to vector<16x128xf32>
    %129 = arith.addf %126, %128 : vector<16x128xf32>
    %130 = vector.extract_strided_slice %125 {offsets = [16, 0], sizes = [16, 128], strides = [1, 1]} : vector<32x128xf32> to vector<16x128xf32>
    %c176 = arith.constant 176 : index
    %c0_61 = arith.constant 0 : index
    %131 = vector.load %arg6[%c176, %c0_61] : memref<192x1xf32, #tpu.memory_space<vmem>>, vector<16x1xf32>
    %132 = vector.broadcast %131 : vector<16x1xf32> to vector<16x128xf32>
    %133 = arith.addf %130, %132 : vector<16x128xf32>
    %134 = arith.maximumf %129, %133 : vector<16x128xf32>
    %135 = arith.subf %129, %133 : vector<16x128xf32>
    %136 = math.absf %135 : vector<16x128xf32>
    %cst_62 = arith.constant 0.000000e+00 : f32
    %137 = vector.broadcast %cst_62 : f32 to vector<16x128xf32>
    %138 = arith.subf %137, %136 : vector<16x128xf32>
    %139 = math.exp %138 : vector<16x128xf32>
    %cst_63 = arith.constant 1.000000e+00 : f32
    %140 = vector.broadcast %cst_63 : f32 to vector<16x128xf32>
    %141 = arith.addf %140, %139 : vector<16x128xf32>
    %142 = math.log %141 : vector<16x128xf32>
    %143 = arith.addf %134, %142 : vector<16x128xf32>
    %c80_64 = arith.constant 80 : index
    %c0_65 = arith.constant 0 : index
    %144 = vector.load %arg5[%c80_64, %c0_65] : memref<96x16xf32, #tpu.memory_space<vmem>>, vector<16x16xf32>
    %cst_66 = arith.constant dense<0.000000e+00> : vector<16x128xf32>
    %145 = tpu.matmul %144, %143, %cst_66 {dimension_numbers = #tpu.dot_dimension_numbers<[1], [0], [0], [1], [0, 0, 1, 1], [], []>} : vector<16x16xf32>, vector<16x128xf32>, vector<16x128xf32> -> vector<16x128xf32>
    %146 = arith.addf %123, %145 : vector<16x128xf32>
    %147 = vector.extract_strided_slice %77 {offsets = [8, 0], sizes = [8, 128], strides = [1, 1]} : vector<16x128xf32> to vector<8x128xf32>
    %148 = vector.extract_strided_slice %77 {offsets = [0, 0], sizes = [8, 128], strides = [1, 1]} : vector<16x128xf32> to vector<8x128xf32>
    %149 = arith.subf %147, %148 : vector<8x128xf32>
    %150 = vector.extract_strided_slice %146 {offsets = [8, 0], sizes = [8, 128], strides = [1, 1]} : vector<16x128xf32> to vector<8x128xf32>
    %151 = vector.extract_strided_slice %146 {offsets = [0, 0], sizes = [8, 128], strides = [1, 1]} : vector<16x128xf32> to vector<8x128xf32>
    %152 = arith.subf %150, %151 : vector<8x128xf32>
    %153 = arith.addf %149, %152 : vector<8x128xf32>
    %cst_67 = arith.constant 2.000000e+00 : f32
    %154 = vector.broadcast %cst_67 : f32 to vector<8x128xf32>
    %155 = arith.mulf %154, %5 : vector<8x128xf32>
    %156 = arith.subf %153, %155 : vector<8x128xf32>
    %cst_68 = arith.constant 0.000000e+00 : f32
    %157 = vector.broadcast %cst_68 : f32 to vector<8x128xf32>
    %158 = arith.subf %157, %156 : vector<8x128xf32>
    %159 = math.exp %158 : vector<8x128xf32>
    %cst_69 = arith.constant 1.000000e+00 : f32
    %160 = vector.broadcast %cst_69 : f32 to vector<8x128xf32>
    %161 = arith.addf %160, %159 : vector<8x128xf32>
    %162 = tpu.reciprocal %161 {approx = true} : vector<8x128xf32> -> vector<8x128xf32>
    %c0_70 = arith.constant 0 : index
    %c0_71 = arith.constant 0 : index
    %163 = vector.load %arg7[%c0_70, %c0_71] : memref<8x128xf32, #tpu.memory_space<vmem>>, vector<8x128xf32>
    tpu.vector_store %arg7[%c0_70, %c0_71], %162 {strides = array<i32>} : memref<8x128xf32, #tpu.memory_space<vmem>>, vector<8x128xf32>,
    return
  }
  func.func @transform_0(%arg0: i32) -> (i32, i32) {
    %c0_i32 = arith.constant 0 : i32
    %c0_i32_0 = arith.constant 0 : i32
    return %c0_i32, %arg0 : i32, i32
  }
  func.func @transform_1(%arg0: i32) -> (i32, i32) {
    %c0_i32 = arith.constant 0 : i32
    %c0_i32_0 = arith.constant 0 : i32
    %c0_i32_1 = arith.constant 0 : i32
    return %c0_i32, %c0_i32_0 : i32, i32
  }
  func.func @transform_2(%arg0: i32) -> (i32, i32) {
    %c0_i32 = arith.constant 0 : i32
    %c0_i32_0 = arith.constant 0 : i32
    %c0_i32_1 = arith.constant 0 : i32
    return %c0_i32, %c0_i32_0 : i32, i32
  }
  func.func @transform_3(%arg0: i32) -> (i32, i32) {
    %c0_i32 = arith.constant 0 : i32
    %c0_i32_0 = arith.constant 0 : i32
    %c0_i32_1 = arith.constant 0 : i32
    return %c0_i32, %c0_i32_0 : i32, i32
  }
  func.func @transform_4(%arg0: i32) -> (i32, i32) {
    %c0_i32 = arith.constant 0 : i32
    %c0_i32_0 = arith.constant 0 : i32
    %c0_i32_1 = arith.constant 0 : i32
    return %c0_i32, %c0_i32_0 : i32, i32
  }
  func.func @transform_5(%arg0: i32) -> (i32, i32) {
    %c0_i32 = arith.constant 0 : i32
    %c0_i32_0 = arith.constant 0 : i32
    %c0_i32_1 = arith.constant 0 : i32
    return %c0_i32, %c0_i32_0 : i32, i32
  }
  func.func @transform_6(%arg0: i32) -> (i32, i32) {
    %c0_i32 = arith.constant 0 : i32
    %c0_i32_0 = arith.constant 0 : i32
    return %c0_i32, %arg0 : i32, i32
  }
}

</mosaic_0001>

<llo_original>
// kernel: forward.1
$region0: #{forward.1}
  #allocation0 [shape = 'u32[]', space=smem, size = 0x4, offset = 0x4, fixed_abs, tag = 'smem constant byte address 0x4 - core index']
  #allocation1 [shape = 'u32[72,128]{1,0:T(1,128)}', space=vmem, size = 0x9000, scoped, tag = 'internal scratch']
  %s0 = inlined_call_operand.vmem [shape: bf16[32,256], index: 0, kind: input, shape index: {}]
  %s1 = inlined_call_operand.vmem [shape: bf16[8,32], index: 1, kind: input, shape index: {}]
  %s2 = inlined_call_operand.vmem [shape: f32[8,1], index: 2, kind: input, shape index: {}]
  %s3 = inlined_call_operand.vmem [shape: f32[192,16], index: 3, kind: input, shape index: {}]
  %s4 = inlined_call_operand.vmem [shape: f32[96,16], index: 4, kind: input, shape index: {}]
  %s5 = inlined_call_operand.vmem [shape: f32[192,1], index: 5, kind: input, shape index: {}]
  %s6 = inlined_call_operand.hbm [shape: f32[8,256], index: 6, kind: output, shape index: {}]
  %s7 = sld [smem:[#allocation0]]
  $region98: #{forward.1} parent=0
    _
  %s9 = ssub.s32 1, %s7
  %s10 = scalar_select 0, %s9, %s7
  $region1: #{forward.1} parent=0
    #allocation2 [shape = 'u8[16384]{0}', space=vmem, size = 0x4000, scoped, tag = 'input window, operand 0']
    #allocation3 [shape = 'u8[8192]{0}', space=vmem, size = 0x2000, scoped, tag = 'output window, operand 0']
    #allocation4 [shape = 's32[2]{0}', space=sflag, size = 0x8, scoped, tag = 'scoped memory for forward.1']
    %11 = vsyncpa [#allocation4], 0
    %s12 = scalar_lea.sflag [#allocation4], 1
    %13 = vsyncpa %s12, 0
    loop: start=0, step=1, limit=4
    $region2: #{forward.1} parent=1 // loop_pre_header
      _
    $region3: #{forward.1} parent=1 // loop_header
      %s15 = sphi 0, %s19
      %p16 = scmp.ge.s32.totalorder %s15, 4
      %s25 = sphi 0, %s27
      %s28 = sphi 0, %s25
      %s29 = sphi 0, %s28
      %s45 = sphi 0, %s29
      %s49 = sphi 0, %s49
      %s51 = sphi 0, %s49
      %s52 = sphi 0, %s51
      %s66 = sphi 0, %s52
      %s70 = sphi 0, %s70
      %s72 = sphi 0, %s70
      %s73 = sphi 0, %s72
      %s87 = sphi 0, %s73
      %s91 = sphi 0, %s91
      %s93 = sphi 0, %s91
      %s94 = sphi 0, %s93
      %s108 = sphi 0, %s94
      %s112 = sphi 0, %s112
      %s114 = sphi 0, %s112
      %s115 = sphi 0, %s114
      %s129 = sphi 0, %s115
      %s133 = sphi 0, %s133
      %s135 = sphi 0, %s133
      %s136 = sphi 0, %s135
      %s150 = sphi 0, %s136
      %s156 = sphi 0, %s158
      %s159 = sphi 0, %s156
      %s160 = sphi 0, %s159
      %s176 = sphi 0, %s160
    $region4: #{forward.1} parent=1 // loop_header_branch
      %18 = sbr.rel (%p16) target = $region8
    $region5: #{forward.1} parent=1 // loop_body
      %s20 = ssub.s32 %s15, 1
      %s21 = ssub.s32 %s15, 2
      %s22 = sadd.s32 %s15, 1
      %s23 = ssub.s32 %s15, %s22
      %p24 = scmp.eq.s32.totalorder %s23, 0
      %s26 = sadd.s32 %s25, 1
      %s27 = scalar_select %p24, %s25, %s26
      %p30 = pneg %p24
      %p31 = scmp.eq.s32.totalorder %s15, 1
      %p32 = por %p30, %p31
      %p33 = scmp.ne.s32.totalorder %s25, %s28
      %p34 = scmp.eq.s32.totalorder %s15, 0
      %p35 = por %p33, %p34
      %p36 = scmp.ne.s32.totalorder %s25, %s28
      %p37 = scmp.eq.s32.totalorder %s20, 1
      %p38 = por %p36, %p37
      %p39 = scmp.ne.s32.totalorder %s28, %s29
      %p40 = scmp.eq.s32.totalorder %s20, 0
      %p41 = por %p39, %p40
      %p42 = scmp.ne.s32.totalorder %s28, %s29
      %p43 = scmp.eq.s32.totalorder %s21, 1
      %p44 = por %p42, %p43
      %p46 = scmp.ne.s32.totalorder %s29, %s45
      %p47 = scmp.eq.s32.totalorder %s21, 0
      %p48 = por %p46, %p47
      %s50 = sadd.s32 %s49, 1
      %p53 = scmp.eq.s32.totalorder %s15, 1
      %p54 = scmp.ne.s32.totalorder %s49, %s51
      %p55 = scmp.eq.s32.totalorder %s15, 0
      %p56 = por %p54, %p55
      %p57 = scmp.ne.s32.totalorder %s49, %s51
      %p58 = scmp.eq.s32.totalorder %s20, 1
      %p59 = por %p57, %p58
      %p60 = scmp.ne.s32.totalorder %s51, %s52
      %p61 = scmp.eq.s32.totalorder %s20, 0
      %p62 = por %p60, %p61
      %p63 = scmp.ne.s32.totalorder %s51, %s52
      %p64 = scmp.eq.s32.totalorder %s21, 1
      %p65 = por %p63, %p64
      %p67 = scmp.ne.s32.totalorder %s52, %s66
      %p68 = scmp.eq.s32.totalorder %s21, 0
      %p69 = por %p67, %p68
      %s71 = sadd.s32 %s70, 1
      %p74 = scmp.eq.s32.totalorder %s15, 1
      %p75 = scmp.ne.s32.totalorder %s70, %s72
      %p76 = scmp.eq.s32.totalorder %s15, 0
      %p77 = por %p75, %p76
      %p78 = scmp.ne.s32.totalorder %s70, %s72
      %p79 = scmp.eq.s32.totalorder %s20, 1
      %p80 = por %p78, %p79
      %p81 = scmp.ne.s32.totalorder %s72, %s73
      %p82 = scmp.eq.s32.totalorder %s20, 0
      %p83 = por %p81, %p82
      %p84 = scmp.ne.s32.totalorder %s72, %s73
      %p85 = scmp.eq.s32.totalorder %s21, 1
      %p86 = por %p84, %p85
      %p88 = scmp.ne.s32.totalorder %s73, %s87
      %p89 = scmp.eq.s32.totalorder %s21, 0
      %p90 = por %p88, %p89
      %s92 = sadd.s32 %s91, 1
      %p95 = scmp.eq.s32.totalorder %s15, 1
      %p96 = scmp.ne.s32.totalorder %s91, %s93
      %p97 = scmp.eq.s32.totalorder %s15, 0
      %p98 = por %p96, %p97
      %p99 = scmp.ne.s32.totalorder %s91, %s93
      %p100 = scmp.eq.s32.totalorder %s20, 1
      %p101 = por %p99, %p100
      %p102 = scmp.ne.s32.totalorder %s93, %s94
      %p103 = scmp.eq.s32.totalorder %s20, 0
      %p104 = por %p102, %p103
      %p105 = scmp.ne.s32.totalorder %s93, %s94
      %p106 = scmp.eq.s32.totalorder %s21, 1
      %p107 = por %p105, %p106
      %p109 = scmp.ne.s32.totalorder %s94, %s108
      %p110 = scmp.eq.s32.totalorder %s21, 0
      %p111 = por %p109, %p110
      %s113 = sadd.s32 %s112, 1
      %p116 = scmp.eq.s32.totalorder %s15, 1
      %p117 = scmp.ne.s32.totalorder %s112, %s114
      %p118 = scmp.eq.s32.totalorder %s15, 0
      %p119 = por %p117, %p118
      %p120 = scmp.ne.s32.totalorder %s112, %s114
      %p121 = scmp.eq.s32.totalorder %s20, 1
      %p122 = por %p120, %p121
      %p123 = scmp.ne.s32.totalorder %s114, %s115
      %p124 = scmp.eq.s32.totalorder %s20, 0
      %p125 = por %p123, %p124
      %p126 = scmp.ne.s32.totalorder %s114, %s115
      %p127 = scmp.eq.s32.totalorder %s21, 1
      %p128 = por %p126, %p127
      %p130 = scmp.ne.s32.totalorder %s115, %s129
      %p131 = scmp.eq.s32.totalorder %s21, 0
      %p132 = por %p130, %p131
      %s134 = sadd.s32 %s133, 1
      %p137 = scmp.eq.s32.totalorder %s15, 1
      %p138 = scmp.ne.s32.totalorder %s133, %s135
      %p139 = scmp.eq.s32.totalorder %s15, 0
      %p140 = por %p138, %p139
      %p141 = scmp.ne.s32.totalorder %s133, %s135
      %p142 = scmp.eq.s32.totalorder %s20, 1
      %p143 = por %p141, %p142
      %p144 = scmp.ne.s32.totalorder %s135, %s136
      %p145 = scmp.eq.s32.totalorder %s20, 0
      %p146 = por %p144, %p145
      %p147 = scmp.ne.s32.totalorder %s135, %s136
      %p148 = scmp.eq.s32.totalorder %s21, 1
      %p149 = por %p147, %p148
      %p151 = scmp.ne.s32.totalorder %s136, %s150
      %p152 = scmp.eq.s32.totalorder %s21, 0
      %p153 = por %p151, %p152
      %s154 = ssub.s32 %s15, %s22
      %p155 = scmp.eq.s32.totalorder %s154, 0
      %s157 = sadd.s32 %s156, 1
      %s158 = scalar_select %p155, %s156, %s157
      %p161 = pneg %p155
      %p162 = scmp.eq.s32.totalorder %s15, 1
      %p163 = por %p161, %p162
      %p164 = scmp.ne.s32.totalorder %s156, %s159
      %p165 = scmp.eq.s32.totalorder %s15, 0
      %p166 = por %p164, %p165
      %p167 = scmp.ne.s32.totalorder %s156, %s159
      %p168 = scmp.eq.s32.totalorder %s20, 1
      %p169 = por %p167, %p168
      %p170 = scmp.ne.s32.totalorder %s159, %s160
      %p171 = scmp.eq.s32.totalorder %s20, 0
      %p172 = por %p170, %p171
      %p173 = scmp.ne.s32.totalorder %s159, %s160
      %p174 = scmp.eq.s32.totalorder %s21, 1
      %p175 = por %p173, %p174
      %p177 = scmp.ne.s32.totalorder %s160, %s176
      %p178 = scmp.eq.s32.totalorder %s21, 0
      %p179 = por %p177, %p178
      %p180 = scmp.le.s32.totalorder 1, %s15
      %p181 = scmp.lt.s32.totalorder %s15, 3
      %p182 = pnand %p180, %p181
      %p183 = pneg %p182
      // Predicated region
      $region9: #{forward.1} parent=5 // pred_check
        _
      $region10: #{forward.1} parent=5 // pred_check_branch
        %185 = sbr.rel (%p182) target = $region12
      $region11: #{forward.1} parent=5 // pred_region
        %s186 = ssub.s32 %s15, 1
        // Predicated region
        $region13: #{forward.1} parent=11 // pred_check
          %p187 = pneg %p62
        $region14: #{forward.1} parent=11 // pred_check_branch
          %189 = sbr.rel (%p187) target = $region16
        $region15: #{forward.1} parent=11 // pred_region
          _
        $region16: #{forward.1} parent=11 // pred_fallthru
          _
        // Predicated region
        $region17: #{forward.1} parent=11 // pred_check
          %p190 = pneg %p83
        $region18: #{forward.1} parent=11 // pred_check_branch
          %192 = sbr.rel (%p190) target = $region20
        $region19: #{forward.1} parent=11 // pred_region
          _
        $region20: #{forward.1} parent=11 // pred_fallthru
          _
        // Predicated region
        $region21: #{forward.1} parent=11 // pred_check
          %p193 = pneg %p104
        $region22: #{forward.1} parent=11 // pred_check_branch
          %195 = sbr.rel (%p193) target = $region24
        $region23: #{forward.1} parent=11 // pred_region
          _
        $region24: #{forward.1} parent=11 // pred_fallthru
          _
        // Predicated region
        $region25: #{forward.1} parent=11 // pred_check
          %p196 = pneg %p125
        $region26: #{forward.1} parent=11 // pred_check_branch
          %198 = sbr.rel (%p196) target = $region28
        $region27: #{forward.1} parent=11 // pred_region
          _
        $region28: #{forward.1} parent=11 // pred_fallthru
          _
        // Predicated region
        $region29: #{forward.1} parent=11 // pred_check
          %p199 = pneg %p146
        $region30: #{forward.1} parent=11 // pred_check_branch
          %201 = sbr.rel (%p199) target = $region32
        $region31: #{forward.1} parent=11 // pred_region
          _
        $region32: #{forward.1} parent=11 // pred_fallthru
          _
      $region12: #{forward.1} parent=5 // pred_fallthru
        _
      %p202 = scmp.lt.s32.totalorder %s15, 2
      // Predicated region
      $region33: #{forward.1} parent=5 // pred_check
        %p203 = pneg %p202
      $region34: #{forward.1} parent=5 // pred_check_branch
        %205 = sbr.rel (%p203) target = $region36
      $region35: #{forward.1} parent=5 // pred_region
        // Predicated region
        $region37: #{forward.1} parent=35 // pred_check
          %p206 = pneg %p35
        $region38: #{forward.1} parent=35 // pred_check_branch
          %208 = sbr.rel (%p206) target = $region40
        $region39: #{forward.1} parent=35 // pred_region
          %s209 = sand.u32 %s25, 1
          %s210 = sand.u32 %s25, 1
          %s211 = smul.addr %s210, 16
          %s212 = scalar_lea.vmem [#allocation2], %s211
          %s213 = smul.addr %s15, 4
          %s214 = scalar_lea.vmem %s0, %s213
          // Predicated region
          $region41: #{forward.1} parent=39 // pred_check
            _
          $region42: #{forward.1} parent=39 // pred_check_branch
            %216 = sbr.rel (0) target = $region44
          $region43: #{forward.1} parent=39 // pred_region
            // Predicated region
            $region45: #{forward.1} parent=43 // pred_check
              _
            $region46: #{forward.1} parent=43 // pred_check_branch
              %218 = sbr.rel target = $region48
            $region47: #{forward.1} parent=43 // pred_region
              // Predicated region
              $region60: #{forward.1} parent=47 // pred_check
                _
              $region61: #{forward.1} parent=47 // pred_check_branch
                %240 = sbr.rel (0) target = $region63
              $region62: #{forward.1} parent=47 // pred_region
                loop: start=0, step=1, limit=1
                $region64: #{forward.1} parent=62 // loop_pre_header
                  _
                $region65: #{forward.1} parent=62 // loop_header
                  %s242 = sphi 0, %s246
                  %p243 = scmp.ge.s32.totalorder %s242, 1
                  %s247 = sphi %s214, %s214
                  %s248 = sphi %s212, %s212
                $region66: #{forward.1} parent=62 // loop_header_branch
                  %245 = sbr.rel (%p243) target = $region70
                $region67: #{forward.1} parent=62 // loop_body
                  _
                $region68: #{forward.1} parent=62 // loop_footer
                  %s246 = sadd.s32 1, %s242
                $region69: #{forward.1} parent=62 // loop_footer_branch
                  %241 = sbr.rel target = $region65
                $region70: #{forward.1} parent=62 // loop_exit
                  _
                %s250 = ssub.s32 16, 1
                loop: start=0, step=1, limit=1
                $region71: #{forward.1} parent=62 // loop_pre_header
                  _
                $region72: #{forward.1} parent=62 // loop_header
                  %s252 = sphi 0, %s256
                  %p253 = scmp.ge.s32.totalorder %s252, 1
                  %s257 = sphi %s214, %s214
                  %s258 = sphi %s212, %s212
                $region73: #{forward.1} parent=62 // loop_header_branch
                  %255 = sbr.rel (%p253) target = $region77
                $region74: #{forward.1} parent=62 // loop_body
                  %v259 = vld [vmem:[%s257] sm:%s250]
                  %260 = vst [vmem:[%s258] sm:%s250] %v259
                  %v261 = vld [vmem:[%s257 + $0x8] sm:%s250]
                  %262 = vst [vmem:[%s258 + $0x4] sm:%s250] %v261
                  %v263 = vld [vmem:[%s257 + $0x10] sm:%s250]
                  %264 = vst [vmem:[%s258 + $0x8] sm:%s250] %v263
                  %v265 = vld [vmem:[%s257 + $0x18] sm:%s250]
                  %266 = vst [vmem:[%s258 + $0xc] sm:%s250] %v265
                $region75: #{forward.1} parent=62 // loop_footer
                  %s256 = sadd.s32 1, %s252
                $region76: #{forward.1} parent=62 // loop_footer_branch
                  %251 = sbr.rel target = $region72
                $region77: #{forward.1} parent=62 // loop_exit
                  _
              $region63: #{forward.1} parent=47 // pred_fallthru
                _
            $region48: #{forward.1} parent=43 // pred_fallthru
              _
            // Predicated region
            $region49: #{forward.1} parent=43 // pred_check
              _
            $region50: #{forward.1} parent=43 // pred_check_branch
              %220 = sbr.rel (0) target = $region52
            $region51: #{forward.1} parent=43 // pred_region
              %s222 = ssub.s32 16, 1
              loop: start=0, step=1, limit=1
              $region53: #{forward.1} parent=51 // loop_pre_header
                _
              $region54: #{forward.1} parent=51 // loop_header
                %s224 = sphi 0, %s228
                %p225 = scmp.ge.s32.totalorder %s224, 1
                %s229 = sphi %s214, %s214
                %s230 = sphi %s212, %s212
              $region55: #{forward.1} parent=51 // loop_header_branch
                %227 = sbr.rel (%p225) target = $region59
              $region56: #{forward.1} parent=51 // loop_body
                %v231 = vld [vmem:[%s229] sm:%s222]
                %232 = vst [vmem:[%s230] sm:%s222] %v231
                %v233 = vld [vmem:[%s229 + $0x8] sm:%s222]
                %234 = vst [vmem:[%s230 + $0x4] sm:%s222] %v233
                %v235 = vld [vmem:[%s229 + $0x10] sm:%s222]
                %236 = vst [vmem:[%s230 + $0x8] sm:%s222] %v235
                %v237 = vld [vmem:[%s229 + $0x18] sm:%s222]
                %238 = vst [vmem:[%s230 + $0xc] sm:%s222] %v237
              $region57: #{forward.1} parent=51 // loop_footer
                %s228 = sadd.s32 1, %s224
              $region58: #{forward.1} parent=51 // loop_footer_branch
                %223 = sbr.rel target = $region54
              $region59: #{forward.1} parent=51 // loop_exit
                _
            $region52: #{forward.1} parent=43 // pred_fallthru
              _
          $region44: #{forward.1} parent=39 // pred_fallthru
            _
          %267 = vnop
        $region40: #{forward.1} parent=35 // pred_fallthru
          _
      $region36: #{forward.1} parent=5 // pred_fallthru
        _
      %p268 = scmp.le.s32.totalorder 1, %s15
      %p269 = scmp.lt.s32.totalorder %s15, 3
      %p270 = pnand %p268, %p269
      %p271 = pneg %p270
      // Predicated region
      $region78: #{forward.1} parent=5 // pred_check
        _
      $region79: #{forward.1} parent=5 // pred_check_branch
        %273 = sbr.rel (%p270) target = $region81
      $region80: #{forward.1} parent=5 // pred_region
        %s274 = ssub.s32 %s15, 1
        %s275 = sand.u32 %s28, 1
        %s276 = sand.u32 %s28, 1
        %s277 = smul.addr %s276, 16
        %s278 = scalar_lea.vmem [#allocation2], %s277
        // Predicated region
        $region82: #{forward.1} parent=80 // pred_check
          %p279 = pneg %p41
        $region83: #{forward.1} parent=80 // pred_check_branch
          %281 = sbr.rel (%p279) target = $region85
        $region84: #{forward.1} parent=80 // pred_region
          _
        $region85: #{forward.1} parent=80 // pred_fallthru
          _
        %s282 = sand.u32 %s28, 1
        %s283 = sand.u32 %s28, 1
        %s284 = smul.addr %s283, 16
        %s285 = scalar_lea.vmem [#allocation2], %s284
        %p286 = pneg %p41
        %p287 = pneg %p38
        %p288 = pneg %p62
        %p289 = pneg %p59
        %p290 = pneg %p83
        %p291 = pneg %p80
        %p292 = pneg %p104
        %p293 = pneg %p101
        %p294 = pneg %p125
        %p295 = pneg %p122
        %p296 = pneg %p146
        %p297 = pneg %p143
        %p298 = pneg %p172
        %p299 = pneg %p169
        %s300 = sand.u32 %s159, 1
        %s301 = scalar_lea.sflag [#allocation4], %s300
        %s302 = sand.u32 %s159, 1
        %s303 = smul.addr %s302, 8
        %s304 = scalar_lea.vmem [#allocation3], %s303
        %v306 = vld [vmem:[%s1] sm:$0xf]
        %v307 = vld [vmem:[%s278] sm:$0xf]
        %v308 = vld [vmem:[%s278 + $0x4] sm:$0xf]
        %v309 = vld [vmem:[%s278 + $0x8] sm:$0xf]
        %v310 = vld [vmem:[%s278 + $0xc] sm:$0xf]
        %v311 = vld [vmem:[%s2] sm:$0xff]
        %313 = vset.pattern.permute.xlu0 0
        %314 = vperm.xlu0 %313, %v311
        %v315 = vpop.permute.xlu0 %314
        %v321 = vunpack.c.l.b16 %v307
        %v322 = vunpack.c.l.b16 %v308
        %v323 = vunpack.c.l.b16 %v309
        %v324 = vunpack.c.l.b16 %v310
        %v325 = vpack.c.b16 %v322, %v321
        %v326 = vpack.c.b16 %v324, %v323
        %vm329 = vcmask 261120
        %v331 = vsel %vm329, %v306, 0
        %333 = vmatpush.bf16.msra.mxu0 0
        %334 = vmatpush.bf16.msra.mxu0 0
        %335 = vmatpush.bf16.msra.mxu0 0
        %336 = vmatpush.bf16.msra.mxu0 0
        %337 = vmatpush.bf16.msra.mxu0 0
        %338 = vmatpush.bf16.msra.mxu0 0
        %339 = vmatpush.bf16.msra.mxu0 %v326
        %340 = vmatpush.bf16.msra.mxu0 %v325
        %341 = vmatmul.bf16.gmra.mxu0 %v331
        %v342 = vpop.f32.mrf.mxu0
        %v343 = vadd.f32 %v315, %v342
        %v344 = vpop.f32.mrf.mxu0
        %345 = vdwg.mxu0
        %v346 = vsub.f32 0.0, %v343
        %v347 = vld [vmem:[%s3] sm:$0xff]
        %v348 = vld [vmem:[%s3 + $0x8] sm:$0xff]
        %v349 = vld [vmem:[%s3 + $0x10] sm:$0xff]
        %v350 = vld [vmem:[%s3 + $0x18] sm:$0xff]
        %vm351 = vcmask 130048
        %v353 = vsel %vm351, %v347, 0
        %v356 = vsel %vm351, %v348, 0
        %v359 = vsel %vm351, %v349, 0
        %v362 = vsel %vm351, %v350, 0
        %364 = vmatpush.msra.mxu0 0.0
        %365 = vmatpush.msra.mxu0 0.0
        %366 = vmatpush.msra.mxu0 0.0
        %367 = vmatpush.msra.mxu0 0.0
        %368 = vmatpush.msra.mxu0 0.0
        %369 = vmatpush.msra.mxu0 0.0
        %370 = vmatpush.msra.mxu0 0.0
        %371 = vmatpush.msra.mxu0 0.0
        %372 = vmatpush.msra.mxu0 0.0
        %373 = vmatpush.msra.mxu0 0.0
        %374 = vmatpush.msra.mxu0 0.0
        %375 = vmatpush.msra.mxu0 0.0
        %376 = vmatpush.msra.mxu0 0.0
        %377 = vmatpush.msra.mxu0 0.0
        %378 = vmatpush.msra.mxu0 %v343
        %379 = vmatpush.msra.mxu0 %v346
        %380 = vmatmul.f32.gmra.mxu0 %v353
        %v381 = vpop.f32.mrf.mxu0
        %v382 = vadd.f32 0.0, %v381
        %383 = vmatmul.f32.gmra.mxu0 %v356
        %v384 = vpop.f32.mrf.mxu0
        %v385 = vadd.f32 0.0, %v384
        %386 = vmatmul.f32.gmra.mxu0 %v359
        %v387 = vpop.f32.mrf.mxu0
        %v388 = vadd.f32 0.0, %v387
        %389 = vmatmul.f32.gmra.mxu0 %v362
        %v390 = vpop.f32.mrf.mxu0
        %v391 = vadd.f32 0.0, %v390
        %392 = vdwg.mxu0
        %v393 = vld [vmem:[%s5] sm:$0xff]
        %v394 = vld [vmem:[%s5 + $0x8] sm:$0xff]
        %396 = vset.pattern.permute.xlu0 0
        %397 = vperm.xlu0 %396, %v393
        %v398 = vpop.permute.xlu0 %397
        %401 = vset.pattern.permute.xlu0 0
        %402 = vperm.xlu0 %401, %v394
        %v403 = vpop.permute.xlu0 %402
        %v405 = vadd.f32 %v382, %v398
        %v406 = vadd.f32 %v385, %v403
        %v407 = vld [vmem:[%s5 + $0x10] sm:$0xff]
        %v408 = vld [vmem:[%s5 + $0x18] sm:$0xff]
        %410 = vset.pattern.permute.xlu0 0
        %411 = vperm.xlu0 %410, %v407
        %v412 = vpop.permute.xlu0 %411
        %415 = vset.pattern.permute.xlu0 0
        %416 = vperm.xlu0 %415, %v408
        %v417 = vpop.permute.xlu0 %416
        %v419 = vadd.f32 %v388, %v412
        %v420 = vadd.f32 %v391, %v417
        %v421 = vmax.f32 %v405, %v419
        %v422 = vmax.f32 %v406, %v420
        %v423 = vsub.f32 %v405, %v419
        %v424 = vsub.f32 %v406, %v420
        %v425 = vand.u32 2147483647, %v423
        %v426 = vand.u32 2147483647, %v424
        %v427 = vsub.f32 0.0, %v425
        %v428 = vsub.f32 0.0, %v426
        %v429 = vmul.f32 %v427, 1.442695
        %v430 = vpow.pop %v429
        %v431 = vmul.f32 %v428, 1.442695
        %v432 = vpow.pop %v431
        %v433 = vadd.f32 %v430, 1.0
        %v434 = vadd.f32 %v432, 1.0
        %v435 = vlog2.pop %v433
        %v436 = vmul.f32 %v435, 0.6931472
        %v437 = vlog2.pop %v434
        %v438 = vmul.f32 %v437, 0.6931472
        %v439 = vadd.f32 %v421, %v436
        %v440 = vadd.f32 %v422, %v438
        %v441 = vld [vmem:[%s4] sm:$0xff]
        %v442 = vld [vmem:[%s4 + $0x8] sm:$0xff]
        %v444 = vsel %vm351, %v441, 0
        %v447 = vsel %vm351, %v442, 0
        %449 = vmatpush.msra.mxu0 0.0
        %450 = vmatpush.msra.mxu0 0.0
        %451 = vmatpush.msra.mxu0 0.0
        %452 = vmatpush.msra.mxu0 0.0
        %453 = vmatpush.msra.mxu0 0.0
        %454 = vmatpush.msra.mxu0 0.0
        %455 = vmatpush.msra.mxu0 0.0
        %456 = vmatpush.msra.mxu0 0.0
        %457 = vmatpush.msra.mxu0 0.0
        %458 = vmatpush.msra.mxu0 0.0
        %459 = vmatpush.msra.mxu0 0.0
        %460 = vmatpush.msra.mxu0 0.0
        %461 = vmatpush.msra.mxu0 0.0
        %462 = vmatpush.msra.mxu0 0.0
        %463 = vmatpush.msra.mxu0 %v440
        %464 = vmatpush.msra.mxu0 %v439
        %465 = vmatmul.f32.gmra.mxu0 %v444
        %v466 = vpop.f32.mrf.mxu0
        %v467 = vadd.f32 0.0, %v466
        %468 = vmatmul.f32.gmra.mxu0 %v447
        %v469 = vpop.f32.mrf.mxu0
        %v470 = vadd.f32 0.0, %v469
        %471 = vdwg.mxu0
        %v472 = vadd.f32 %v346, %v467
        %v473 = vadd.f32 %v343, %v470
        %v474 = vld [vmem:[%s3 + $0x20] sm:$0xff]
        %v475 = vld [vmem:[%s3 + $0x28] sm:$0xff]
        %v476 = vld [vmem:[%s3 + $0x30] sm:$0xff]
        %v477 = vld [vmem:[%s3 + $0x38] sm:$0xff]
        %v479 = vsel %vm351, %v474, 0
        %v482 = vsel %vm351, %v475, 0
        %v485 = vsel %vm351, %v476, 0
        %v488 = vsel %vm351, %v477, 0
        %490 = vmatpush.msra.mxu0 0.0
        %491 = vmatpush.msra.mxu0 0.0
        %492 = vmatpush.msra.mxu0 0.0
        %493 = vmatpush.msra.mxu0 0.0
        %494 = vmatpush.msra.mxu0 0.0
        %495 = vmatpush.msra.mxu0 0.0
        %496 = vmatpush.msra.mxu0 0.0
        %497 = vmatpush.msra.mxu0 0.0
        %498 = vmatpush.msra.mxu0 0.0
        %499 = vmatpush.msra.mxu0 0.0
        %500 = vmatpush.msra.mxu0 0.0
        %501 = vmatpush.msra.mxu0 0.0
        %502 = vmatpush.msra.mxu0 0.0
        %503 = vmatpush.msra.mxu0 0.0
        %504 = vmatpush.msra.mxu0 %v473
        %505 = vmatpush.msra.mxu0 %v472
        %506 = vmatmul.f32.gmra.mxu0 %v479
        %v507 = vpop.f32.mrf.mxu0
        %v508 = vadd.f32 0.0, %v507
        %509 = vmatmul.f32.gmra.mxu0 %v482
        %v510 = vpop.f32.mrf.mxu0
        %v511 = vadd.f32 0.0, %v510
        %512 = vmatmul.f32.gmra.mxu0 %v485
        %v513 = vpop.f32.mrf.mxu0
        %v514 = vadd.f32 0.0, %v513
        %515 = vmatmul.f32.gmra.mxu0 %v488
        %v516 = vpop.f32.mrf.mxu0
        %v517 = vadd.f32 0.0, %v516
        %518 = vdwg.mxu0
        %v519 = vld [vmem:[%s5 + $0x20] sm:$0xff]
        %v520 = vld [vmem:[%s5 + $0x28] sm:$0xff]
        %522 = vset.pattern.permute.xlu0 0
        %523 = vperm.xlu0 %522, %v519
        %v524 = vpop.permute.xlu0 %523
        %527 = vset.pattern.permute.xlu0 0
        %528 = vperm.xlu0 %527, %v520
        %v529 = vpop.permute.xlu0 %528
        %v531 = vadd.f32 %v508, %v524
        %v532 = vadd.f32 %v511, %v529
        %v533 = vld [vmem:[%s5 + $0x30] sm:$0xff]
        %v534 = vld [vmem:[%s5 + $0x38] sm:$0xff]
        %536 = vset.pattern.permute.xlu0 0
        %537 = vperm.xlu0 %536, %v533
        %v538 = vpop.permute.xlu0 %537
        %541 = vset.pattern.permute.xlu0 0
        %542 = vperm.xlu0 %541, %v534
        %v543 = vpop.permute.xlu0 %542
        %v545 = vadd.f32 %v514, %v538
        %v546 = vadd.f32 %v517, %v543
        %v547 = vmax.f32 %v531, %v545
        %v548 = vmax.f32 %v532, %v546
        %v549 = vsub.f32 %v531, %v545
        %v550 = vsub.f32 %v532, %v546
        %v551 = vand.u32 2147483647, %v549
        %v552 = vand.u32 2147483647, %v550
        %v553 = vsub.f32 0.0, %v551
        %v554 = vsub.f32 0.0, %v552
        %v555 = vmul.f32 %v553, 1.442695
        %v556 = vpow.pop %v555
        %v557 = vmul.f32 %v554, 1.442695
        %v558 = vpow.pop %v557
        %v559 = vadd.f32 %v556, 1.0
        %v560 = vadd.f32 %v558, 1.0
        %v561 = vlog2.pop %v559
        %v562 = vmul.f32 %v561, 0.6931472
        %v563 = vlog2.pop %v560
        %v564 = vmul.f32 %v563, 0.6931472
        %v565 = vadd.f32 %v547, %v562
        %v566 = vadd.f32 %v548, %v564
        %v567 = vld [vmem:[%s4 + $0x10] sm:$0xff]
        %v568 = vld [vmem:[%s4 + $0x18] sm:$0xff]
        %v570 = vsel %vm351, %v567, 0
        %v573 = vsel %vm351, %v568, 0
        %575 = vmatpush.msra.mxu0 0.0
        %576 = vmatpush.msra.mxu0 0.0
        %577 = vmatpush.msra.mxu0 0.0
        %578 = vmatpush.msra.mxu0 0.0
        %579 = vmatpush.msra.mxu0 0.0
        %580 = vmatpush.msra.mxu0 0.0
        %581 = vmatpush.msra.mxu0 0.0
        %582 = vmatpush.msra.mxu0 0.0
        %583 = vmatpush.msra.mxu0 0.0
        %584 = vmatpush.msra.mxu0 0.0
        %585 = vmatpush.msra.mxu0 0.0
        %586 = vmatpush.msra.mxu0 0.0
        %587 = vmatpush.msra.mxu0 0.0
        %588 = vmatpush.msra.mxu0 0.0
        %589 = vmatpush.msra.mxu0 %v566
        %590 = vmatpush.msra.mxu0 %v565
        %591 = vmatmul.f32.gmra.mxu0 %v570
        %v592 = vpop.f32.mrf.mxu0
        %v593 = vadd.f32 0.0, %v592
        %594 = vmatmul.f32.gmra.mxu0 %v573
        %v595 = vpop.f32.mrf.mxu0
        %v596 = vadd.f32 0.0, %v595
        %597 = vdwg.mxu0
        %v598 = vadd.f32 %v472, %v593
        %v599 = vadd.f32 %v473, %v596
        %v600 = vld [vmem:[%s3 + $0x40] sm:$0xff]
        %v601 = vld [vmem:[%s3 + $0x48] sm:$0xff]
        %v602 = vld [vmem:[%s3 + $0x50] sm:$0xff]
        %v603 = vld [vmem:[%s3 + $0x58] sm:$0xff]
        %v605 = vsel %vm351, %v600, 0
        %v608 = vsel %vm351, %v601, 0
        %v611 = vsel %vm351, %v602, 0
        %v614 = vsel %vm351, %v603, 0
        %616 = vmatpush.msra.mxu0 0.0
        %617 = vmatpush.msra.mxu0 0.0
        %618 = vmatpush.msra.mxu0 0.0
        %619 = vmatpush.msra.mxu0 0.0
        %620 = vmatpush.msra.mxu0 0.0
        %621 = vmatpush.msra.mxu0 0.0
        %622 = vmatpush.msra.mxu0 0.0
        %623 = vmatpush.msra.mxu0 0.0
        %624 = vmatpush.msra.mxu0 0.0
        %625 = vmatpush.msra.mxu0 0.0
        %626 = vmatpush.msra.mxu0 0.0
        %627 = vmatpush.msra.mxu0 0.0
        %628 = vmatpush.msra.mxu0 0.0
        %629 = vmatpush.msra.mxu0 0.0
        %630 = vmatpush.msra.mxu0 %v599
        %631 = vmatpush.msra.mxu0 %v598
        %632 = vmatmul.f32.gmra.mxu0 %v605
        %v633 = vpop.f32.mrf.mxu0
        %v634 = vadd.f32 0.0, %v633
        %635 = vmatmul.f32.gmra.mxu0 %v608
        %v636 = vpop.f32.mrf.mxu0
        %v637 = vadd.f32 0.0, %v636
        %638 = vmatmul.f32.gmra.mxu0 %v611
        %v639 = vpop.f32.mrf.mxu0
        %v640 = vadd.f32 0.0, %v639
        %641 = vmatmul.f32.gmra.mxu0 %v614
        %v642 = vpop.f32.mrf.mxu0
        %v643 = vadd.f32 0.0, %v642
        %644 = vdwg.mxu0
        %v645 = vld [vmem:[%s5 + $0x40] sm:$0xff]
        %v646 = vld [vmem:[%s5 + $0x48] sm:$0xff]
        %648 = vset.pattern.permute.xlu0 0
        %649 = vperm.xlu0 %648, %v645
        %v650 = vpop.permute.xlu0 %649
        %653 = vset.pattern.permute.xlu0 0
        %654 = vperm.xlu0 %653, %v646
        %v655 = vpop.permute.xlu0 %654
        %v657 = vadd.f32 %v634, %v650
        %v658 = vadd.f32 %v637, %v655
        %v659 = vld [vmem:[%s5 + $0x50] sm:$0xff]
        %v660 = vld [vmem:[%s5 + $0x58] sm:$0xff]
        %662 = vset.pattern.permute.xlu0 0
        %663 = vperm.xlu0 %662, %v659
        %v664 = vpop.permute.xlu0 %663
        %667 = vset.pattern.permute.xlu0 0
        %668 = vperm.xlu0 %667, %v660
        %v669 = vpop.permute.xlu0 %668
        %v671 = vadd.f32 %v640, %v664
        %v672 = vadd.f32 %v643, %v669
        %v673 = vmax.f32 %v657, %v671
        %v674 = vmax.f32 %v658, %v672
        %v675 = vsub.f32 %v657, %v671
        %v676 = vsub.f32 %v658, %v672
        %v677 = vand.u32 2147483647, %v675
        %v678 = vand.u32 2147483647, %v676
        %v679 = vsub.f32 0.0, %v677
        %v680 = vsub.f32 0.0, %v678
        %v681 = vmul.f32 %v679, 1.442695
        %v682 = vpow.pop %v681
        %v683 = vmul.f32 %v680, 1.442695
        %v684 = vpow.pop %v683
        %v685 = vadd.f32 %v682, 1.0
        %v686 = vadd.f32 %v684, 1.0
        %v687 = vlog2.pop %v685
        %v688 = vmul.f32 %v687, 0.6931472
        %v689 = vlog2.pop %v686
        %v690 = vmul.f32 %v689, 0.6931472
        %v691 = vadd.f32 %v673, %v688
        %v692 = vadd.f32 %v674, %v690
        %v693 = vld [vmem:[%s4 + $0x20] sm:$0xff]
        %v694 = vld [vmem:[%s4 + $0x28] sm:$0xff]
        %v696 = vsel %vm351, %v693, 0
        %v699 = vsel %vm351, %v694, 0
        %701 = vmatpush.msra.mxu0 0.0
        %702 = vmatpush.msra.mxu0 0.0
        %703 = vmatpush.msra.mxu0 0.0
        %704 = vmatpush.msra.mxu0 0.0
        %705 = vmatpush.msra.mxu0 0.0
        %706 = vmatpush.msra.mxu0 0.0
        %707 = vmatpush.msra.mxu0 0.0
        %708 = vmatpush.msra.mxu0 0.0
        %709 = vmatpush.msra.mxu0 0.0
        %710 = vmatpush.msra.mxu0 0.0
        %711 = vmatpush.msra.mxu0 0.0
        %712 = vmatpush.msra.mxu0 0.0
        %713 = vmatpush.msra.mxu0 0.0
        %714 = vmatpush.msra.mxu0 0.0
        %715 = vmatpush.msra.mxu0 %v692
        %716 = vmatpush.msra.mxu0 %v691
        %717 = vmatmul.f32.gmra.mxu0 %v696
        %v718 = vpop.f32.mrf.mxu0
        %v719 = vadd.f32 0.0, %v718
        %720 = vmatmul.f32.gmra.mxu0 %v699
        %v721 = vpop.f32.mrf.mxu0
        %v722 = vadd.f32 0.0, %v721
        %723 = vdwg.mxu0
        %v724 = vadd.f32 %v598, %v719
        %v725 = vadd.f32 %v599, %v722
        %v726 = vld [vmem:[%s3 + $0x60] sm:$0xff]
        %v727 = vld [vmem:[%s3 + $0x68] sm:$0xff]
        %v728 = vld [vmem:[%s3 + $0x70] sm:$0xff]
        %v729 = vld [vmem:[%s3 + $0x78] sm:$0xff]
        %v731 = vsel %vm351, %v726, 0
        %v734 = vsel %vm351, %v727, 0
        %v737 = vsel %vm351, %v728, 0
        %v740 = vsel %vm351, %v729, 0
        %742 = vmatpush.msra.mxu0 0.0
        %743 = vmatpush.msra.mxu0 0.0
        %744 = vmatpush.msra.mxu0 0.0
        %745 = vmatpush.msra.mxu0 0.0
        %746 = vmatpush.msra.mxu0 0.0
        %747 = vmatpush.msra.mxu0 0.0
        %748 = vmatpush.msra.mxu0 0.0
        %749 = vmatpush.msra.mxu0 0.0
        %750 = vmatpush.msra.mxu0 0.0
        %751 = vmatpush.msra.mxu0 0.0
        %752 = vmatpush.msra.mxu0 0.0
        %753 = vmatpush.msra.mxu0 0.0
        %754 = vmatpush.msra.mxu0 0.0
        %755 = vmatpush.msra.mxu0 0.0
        %756 = vmatpush.msra.mxu0 %v343
        %757 = vmatpush.msra.mxu0 %v346
        %758 = vmatmul.f32.gmra.mxu0 %v731
        %v759 = vpop.f32.mrf.mxu0
        %v760 = vadd.f32 0.0, %v759
        %761 = vmatmul.f32.gmra.mxu0 %v734
        %v762 = vpop.f32.mrf.mxu0
        %v763 = vadd.f32 0.0, %v762
        %764 = vmatmul.f32.gmra.mxu0 %v737
        %v765 = vpop.f32.mrf.mxu0
        %v766 = vadd.f32 0.0, %v765
        %767 = vmatmul.f32.gmra.mxu0 %v740
        %v768 = vpop.f32.mrf.mxu0
        %v769 = vadd.f32 0.0, %v768
        %770 = vdwg.mxu0
        %v771 = vld [vmem:[%s5 + $0x60] sm:$0xff]
        %v772 = vld [vmem:[%s5 + $0x68] sm:$0xff]
        %774 = vset.pattern.permute.xlu0 0
        %775 = vperm.xlu0 %774, %v771
        %v776 = vpop.permute.xlu0 %775
        %779 = vset.pattern.permute.xlu0 0
        %780 = vperm.xlu0 %779, %v772
        %v781 = vpop.permute.xlu0 %780
        %v783 = vadd.f32 %v760, %v776
        %v784 = vadd.f32 %v763, %v781
        %v785 = vld [vmem:[%s5 + $0x70] sm:$0xff]
        %v786 = vld [vmem:[%s5 + $0x78] sm:$0xff]
        %788 = vset.pattern.permute.xlu0 0
        %789 = vperm.xlu0 %788, %v785
        %v790 = vpop.permute.xlu0 %789
        %793 = vset.pattern.permute.xlu0 0
        %794 = vperm.xlu0 %793, %v786
        %v795 = vpop.permute.xlu0 %794
        %v797 = vadd.f32 %v766, %v790
        %v798 = vadd.f32 %v769, %v795
        %v799 = vmax.f32 %v783, %v797
        %v800 = vmax.f32 %v784, %v798
        %v801 = vsub.f32 %v783, %v797
        %v802 = vsub.f32 %v784, %v798
        %v803 = vand.u32 2147483647, %v801
        %v804 = vand.u32 2147483647, %v802
        %v805 = vsub.f32 0.0, %v803
        %v806 = vsub.f32 0.0, %v804
        %v807 = vmul.f32 %v805, 1.442695
        %v808 = vpow.pop %v807
        %v809 = vmul.f32 %v806, 1.442695
        %v810 = vpow.pop %v809
        %v811 = vadd.f32 %v808, 1.0
        %v812 = vadd.f32 %v810, 1.0
        %v813 = vlog2.pop %v811
        %v814 = vmul.f32 %v813, 0.6931472
        %v815 = vlog2.pop %v812
        %v816 = vmul.f32 %v815, 0.6931472
        %v817 = vadd.f32 %v799, %v814
        %v818 = vadd.f32 %v800, %v816
        %v819 = vld [vmem:[%s4 + $0x30] sm:$0xff]
        %v820 = vld [vmem:[%s4 + $0x38] sm:$0xff]
        %v822 = vsel %vm351, %v819, 0
        %v825 = vsel %vm351, %v820, 0
        %827 = vmatpush.msra.mxu0 0.0
        %828 = vmatpush.msra.mxu0 0.0
        %829 = vmatpush.msra.mxu0 0.0
        %830 = vmatpush.msra.mxu0 0.0
        %831 = vmatpush.msra.mxu0 0.0
        %832 = vmatpush.msra.mxu0 0.0
        %833 = vmatpush.msra.mxu0 0.0
        %834 = vmatpush.msra.mxu0 0.0
        %835 = vmatpush.msra.mxu0 0.0
        %836 = vmatpush.msra.mxu0 0.0
        %837 = vmatpush.msra.mxu0 0.0
        %838 = vmatpush.msra.mxu0 0.0
        %839 = vmatpush.msra.mxu0 0.0
        %840 = vmatpush.msra.mxu0 0.0
        %841 = vmatpush.msra.mxu0 %v818
        %842 = vmatpush.msra.mxu0 %v817
        %843 = vmatmul.f32.gmra.mxu0 %v822
        %v844 = vpop.f32.mrf.mxu0
        %v845 = vadd.f32 0.0, %v844
        %846 = vmatmul.f32.gmra.mxu0 %v825
        %v847 = vpop.f32.mrf.mxu0
        %v848 = vadd.f32 0.0, %v847
        %849 = vdwg.mxu0
        %v850 = vadd.f32 %v346, %v845
        %v851 = vadd.f32 %v343, %v848
        %v852 = vld [vmem:[%s3 + $0x80] sm:$0xff]
        %v853 = vld [vmem:[%s3 + $0x88] sm:$0xff]
        %v854 = vld [vmem:[%s3 + $0x90] sm:$0xff]
        %v855 = vld [vmem:[%s3 + $0x98] sm:$0xff]
        %v857 = vsel %vm351, %v852, 0
        %v860 = vsel %vm351, %v853, 0
        %v863 = vsel %vm351, %v854, 0
        %v866 = vsel %vm351, %v855, 0
        %868 = vmatpush.msra.mxu0 0.0
        %869 = vmatpush.msra.mxu0 0.0
        %870 = vmatpush.msra.mxu0 0.0
        %871 = vmatpush.msra.mxu0 0.0
        %872 = vmatpush.msra.mxu0 0.0
        %873 = vmatpush.msra.mxu0 0.0
        %874 = vmatpush.msra.mxu0 0.0
        %875 = vmatpush.msra.mxu0 0.0
        %876 = vmatpush.msra.mxu0 0.0
        %877 = vmatpush.msra.mxu0 0.0
        %878 = vmatpush.msra.mxu0 0.0
        %879 = vmatpush.msra.mxu0 0.0
        %880 = vmatpush.msra.mxu0 0.0
        %881 = vmatpush.msra.mxu0 0.0
        %882 = vmatpush.msra.mxu0 %v851
        %883 = vmatpush.msra.mxu0 %v850
        %884 = vmatmul.f32.gmra.mxu0 %v857
        %v885 = vpop.f32.mrf.mxu0
        %v886 = vadd.f32 0.0, %v885
        %887 = vmatmul.f32.gmra.mxu0 %v860
        %v888 = vpop.f32.mrf.mxu0
        %v889 = vadd.f32 0.0, %v888
        %890 = vmatmul.f32.gmra.mxu0 %v863
        %v891 = vpop.f32.mrf.mxu0
        %v892 = vadd.f32 0.0, %v891
        %893 = vmatmul.f32.gmra.mxu0 %v866
        %v894 = vpop.f32.mrf.mxu0
        %v895 = vadd.f32 0.0, %v894
        %896 = vdwg.mxu0
        %v897 = vld [vmem:[%s5 + $0x80] sm:$0xff]
        %v898 = vld [vmem:[%s5 + $0x88] sm:$0xff]
        %900 = vset.pattern.permute.xlu0 0
        %901 = vperm.xlu0 %900, %v897
        %v902 = vpop.permute.xlu0 %901
        %905 = vset.pattern.permute.xlu0 0
        %906 = vperm.xlu0 %905, %v898
        %v907 = vpop.permute.xlu0 %906
        %v909 = vadd.f32 %v886, %v902
        %v910 = vadd.f32 %v889, %v907
        %v911 = vld [vmem:[%s5 + $0x90] sm:$0xff]
        %v912 = vld [vmem:[%s5 + $0x98] sm:$0xff]
        %914 = vset.pattern.permute.xlu0 0
        %915 = vperm.xlu0 %914, %v911
        %v916 = vpop.permute.xlu0 %915
        %919 = vset.pattern.permute.xlu0 0
        %920 = vperm.xlu0 %919, %v912
        %v921 = vpop.permute.xlu0 %920
        %v923 = vadd.f32 %v892, %v916
        %v924 = vadd.f32 %v895, %v921
        %v925 = vmax.f32 %v909, %v923
        %v926 = vmax.f32 %v910, %v924
        %v927 = vsub.f32 %v909, %v923
        %v928 = vsub.f32 %v910, %v924
        %v929 = vand.u32 2147483647, %v927
        %v930 = vand.u32 2147483647, %v928
        %v931 = vsub.f32 0.0, %v929
        %v932 = vsub.f32 0.0, %v930
        %v933 = vmul.f32 %v931, 1.442695
        %v934 = vpow.pop %v933
        %v935 = vmul.f32 %v932, 1.442695
        %v936 = vpow.pop %v935
        %v937 = vadd.f32 %v934, 1.0
        %v938 = vadd.f32 %v936, 1.0
        %v939 = vlog2.pop %v937
        %v940 = vmul.f32 %v939, 0.6931472
        %v941 = vlog2.pop %v938
        %v942 = vmul.f32 %v941, 0.6931472
        %v943 = vadd.f32 %v925, %v940
        %v944 = vadd.f32 %v926, %v942
        %v945 = vld [vmem:[%s4 + $0x40] sm:$0xff]
        %v946 = vld [vmem:[%s4 + $0x48] sm:$0xff]
        %v948 = vsel %vm351, %v945, 0
        %v951 = vsel %vm351, %v946, 0
        %953 = vmatpush.msra.mxu0 0.0
        %954 = vmatpush.msra.mxu0 0.0
        %955 = vmatpush.msra.mxu0 0.0
        %956 = vmatpush.msra.mxu0 0.0
        %957 = vmatpush.msra.mxu0 0.0
        %958 = vmatpush.msra.mxu0 0.0
        %959 = vmatpush.msra.mxu0 0.0
        %960 = vmatpush.msra.mxu0 0.0
        %961 = vmatpush.msra.mxu0 0.0
        %962 = vmatpush.msra.mxu0 0.0
        %963 = vmatpush.msra.mxu0 0.0
        %964 = vmatpush.msra.mxu0 0.0
        %965 = vmatpush.msra.mxu0 0.0
        %966 = vmatpush.msra.mxu0 0.0
        %967 = vmatpush.msra.mxu0 %v944
        %968 = vmatpush.msra.mxu0 %v943
        %969 = vmatmul.f32.gmra.mxu0 %v948
        %v970 = vpop.f32.mrf.mxu0
        %v971 = vadd.f32 0.0, %v970
        %972 = vmatmul.f32.gmra.mxu0 %v951
        %v973 = vpop.f32.mrf.mxu0
        %v974 = vadd.f32 0.0, %v973
        %975 = vdwg.mxu0
        %v976 = vadd.f32 %v850, %v971
        %v977 = vadd.f32 %v851, %v974
        %v978 = vld [vmem:[%s3 + $0xa0] sm:$0xff]
        %v979 = vld [vmem:[%s3 + $0xa8] sm:$0xff]
        %v980 = vld [vmem:[%s3 + $0xb0] sm:$0xff]
        %v981 = vld [vmem:[%s3 + $0xb8] sm:$0xff]
        %v983 = vsel %vm351, %v978, 0
        %v986 = vsel %vm351, %v979, 0
        %v989 = vsel %vm351, %v980, 0
        %v992 = vsel %vm351, %v981, 0
        %994 = vmatpush.msra.mxu0 0.0
        %995 = vmatpush.msra.mxu0 0.0
        %996 = vmatpush.msra.mxu0 0.0
        %997 = vmatpush.msra.mxu0 0.0
        %998 = vmatpush.msra.mxu0 0.0
        %999 = vmatpush.msra.mxu0 0.0
        %1000 = vmatpush.msra.mxu0 0.0
        %1001 = vmatpush.msra.mxu0 0.0
        %1002 = vmatpush.msra.mxu0 0.0
        %1003 = vmatpush.msra.mxu0 0.0
        %1004 = vmatpush.msra.mxu0 0.0
        %1005 = vmatpush.msra.mxu0 0.0
        %1006 = vmatpush.msra.mxu0 0.0
        %1007 = vmatpush.msra.mxu0 0.0
        %1008 = vmatpush.msra.mxu0 %v977
        %1009 = vmatpush.msra.mxu0 %v976
        %1010 = vmatmul.f32.gmra.mxu0 %v983
        %v1011 = vpop.f32.mrf.mxu0
        %v1012 = vadd.f32 0.0, %v1011
        %1013 = vmatmul.f32.gmra.mxu0 %v986
        %v1014 = vpop.f32.mrf.mxu0
        %v1015 = vadd.f32 0.0, %v1014
        %1016 = vmatmul.f32.gmra.mxu0 %v989
        %v1017 = vpop.f32.mrf.mxu0
        %v1018 = vadd.f32 0.0, %v1017
        %1019 = vmatmul.f32.gmra.mxu0 %v992
        %v1020 = vpop.f32.mrf.mxu0
        %v1021 = vadd.f32 0.0, %v1020
        %1022 = vdwg.mxu0
        %v1023 = vld [vmem:[%s5 + $0xa0] sm:$0xff]
        %v1024 = vld [vmem:[%s5 + $0xa8] sm:$0xff]
        %1026 = vset.pattern.permute.xlu0 0
        %1027 = vperm.xlu0 %1026, %v1023
        %v1028 = vpop.permute.xlu0 %1027
        %1031 = vset.pattern.permute.xlu0 0
        %1032 = vperm.xlu0 %1031, %v1024
        %v1033 = vpop.permute.xlu0 %1032
        %v1035 = vadd.f32 %v1012, %v1028
        %v1036 = vadd.f32 %v1015, %v1033
        %v1037 = vld [vmem:[%s5 + $0xb0] sm:$0xff]
        %v1038 = vld [vmem:[%s5 + $0xb8] sm:$0xff]
        %1040 = vset.pattern.permute.xlu0 0
        %1041 = vperm.xlu0 %1040, %v1037
        %v1042 = vpop.permute.xlu0 %1041
        %1045 = vset.pattern.permute.xlu0 0
        %1046 = vperm.xlu0 %1045, %v1038
        %v1047 = vpop.permute.xlu0 %1046
        %v1049 = vadd.f32 %v1018, %v1042
        %v1050 = vadd.f32 %v1021, %v1047
        %v1051 = vmax.f32 %v1035, %v1049
        %v1052 = vmax.f32 %v1036, %v1050
        %v1053 = vsub.f32 %v1035, %v1049
        %v1054 = vsub.f32 %v1036, %v1050
        %v1055 = vand.u32 2147483647, %v1053
        %v1056 = vand.u32 2147483647, %v1054
        %v1057 = vsub.f32 0.0, %v1055
        %v1058 = vsub.f32 0.0, %v1056
        %v1059 = vmul.f32 %v1057, 1.442695
        %v1060 = vpow.pop %v1059
        %v1061 = vmul.f32 %v1058, 1.442695
        %v1062 = vpow.pop %v1061
        %v1063 = vadd.f32 %v1060, 1.0
        %v1064 = vadd.f32 %v1062, 1.0
        %v1065 = vlog2.pop %v1063
        %v1066 = vmul.f32 %v1065, 0.6931472
        %v1067 = vlog2.pop %v1064
        %v1068 = vmul.f32 %v1067, 0.6931472
        %v1069 = vadd.f32 %v1051, %v1066
        %v1070 = vadd.f32 %v1052, %v1068
        %v1071 = vld [vmem:[%s4 + $0x50] sm:$0xff]
        %v1072 = vld [vmem:[%s4 + $0x58] sm:$0xff]
        %v1074 = vsel %vm351, %v1071, 0
        %v1077 = vsel %vm351, %v1072, 0
        %1079 = vmatpush.msra.mxu0 0.0
        %1080 = vmatpush.msra.mxu0 0.0
        %1081 = vmatpush.msra.mxu0 0.0
        %1082 = vmatpush.msra.mxu0 0.0
        %1083 = vmatpush.msra.mxu0 0.0
        %1084 = vmatpush.msra.mxu0 0.0
        %1085 = vmatpush.msra.mxu0 0.0
        %1086 = vmatpush.msra.mxu0 0.0
        %1087 = vmatpush.msra.mxu0 0.0
        %1088 = vmatpush.msra.mxu0 0.0
        %1089 = vmatpush.msra.mxu0 0.0
        %1090 = vmatpush.msra.mxu0 0.0
        %1091 = vmatpush.msra.mxu0 0.0
        %1092 = vmatpush.msra.mxu0 0.0
        %1093 = vmatpush.msra.mxu0 %v1070
        %1094 = vmatpush.msra.mxu0 %v1069
        %1095 = vmatmul.f32.gmra.mxu0 %v1074
        %v1096 = vpop.f32.mrf.mxu0
        %v1097 = vadd.f32 0.0, %v1096
        %1098 = vmatmul.f32.gmra.mxu0 %v1077
        %v1099 = vpop.f32.mrf.mxu0
        %v1100 = vadd.f32 0.0, %v1099
        %1101 = vdwg.mxu0
        %v1102 = vadd.f32 %v976, %v1097
        %v1103 = vadd.f32 %v977, %v1100
        %v1104 = vsub.f32 %v725, %v724
        %v1105 = vsub.f32 %v1103, %v1102
        %v1106 = vadd.f32 %v1104, %v1105
        %v1107 = vmul.f32 %v343, 2.0
        %v1108 = vsub.f32 %v1106, %v1107
        %v1109 = vsub.f32 0.0, %v1108
        %v1110 = vmul.f32 %v1109, 1.442695
        %v1111 = vpow.pop %v1110
        %v1112 = vadd.f32 %v1111, 1.0
        %v1113 = vrcp.pop %v1112
        %1114 = vst [vmem:[%s304] sm:$0xff] %v1113
        %s1115 = sand.u32 %s159, 1
        %s1116 = scalar_lea.sflag [#allocation4], %s1115
        %s1117 = sand.u32 %s159, 1
        %s1118 = smul.addr %s1117, 8
        %s1119 = scalar_lea.vmem [#allocation3], %s1118
        // Predicated region
        $region86: #{forward.1} parent=80 // pred_check
          %p1120 = pneg %p169
        $region87: #{forward.1} parent=80 // pred_check_branch
          %1122 = sbr.rel (%p1120) target = $region89
        $region88: #{forward.1} parent=80 // pred_region
          %1124 = vsyncadd %s1116, 0
          %s1125 = smul.addr %s20, 8
          %s1126 = scalar_lea.hbm %s6, %s1125
          %s1128 = sshll.u32 %s1119, 4
          %s1129 = int_to_ptr.vmem [resolvable:$true] %s1128
          %s1130 = sshll.u32 %s1126, 4
          %s1131 = int_to_ptr.hbm [resolvable:$true] %s1130
          %1133 = dma.vmem_to_hbm [thread:$0]  %s1129, 128, %s1131, %s1116
        $region89: #{forward.1} parent=80 // pred_fallthru
          _
      $region81: #{forward.1} parent=5 // pred_fallthru
        _
      %p1134 = scmp.le.s32.totalorder 2, %s15
      // Predicated region
      $region90: #{forward.1} parent=5 // pred_check
        %p1135 = pneg %p1134
      $region91: #{forward.1} parent=5 // pred_check_branch
        %1137 = sbr.rel (%p1135) target = $region93
      $region92: #{forward.1} parent=5 // pred_region
        %s1138 = ssub.s32 %s15, 2
        // Predicated region
        $region94: #{forward.1} parent=92 // pred_check
          %p1139 = pneg %p175
        $region95: #{forward.1} parent=92 // pred_check_branch
          %1141 = sbr.rel (%p1139) target = $region97
        $region96: #{forward.1} parent=92 // pred_region
          %s1142 = sand.u32 %s160, 1
          %s1143 = scalar_lea.sflag [#allocation4], %s1142
          %s1144 = sand.u32 %s160, 1
          %s1145 = smul.addr %s1144, 8
          %s1146 = scalar_lea.vmem [#allocation3], %s1145
          %1148 = dma.done %s1143, 128
        $region97: #{forward.1} parent=92 // pred_fallthru
          _
      $region93: #{forward.1} parent=5 // pred_fallthru
        _
    $region6: #{forward.1} parent=1 // loop_footer
      %s19 = sadd.s32 1, %s15
    $region7: #{forward.1} parent=1 // loop_footer_branch
      %14 = sbr.rel target = $region3
    $region8: #{forward.1} parent=1 // loop_exit
      _
    %1149 = vsyncpa [#allocation4], 1
    %s1150 = scalar_lea.sflag [#allocation4], 1
    %1151 = vsyncpa %s1150, 1

</llo_original>
